<compile_context>
chip_gen: v7x
topology: tpu7x:2x2x1
jax: 0.10.0
libtpu: 0.0.40
codegen_flags: <defaults>
</compile_context>

<pallas_src>
import math
import functools

import jax
import jax.numpy as jnp
from jax.experimental import pallas as pl
from jax.experimental.pallas import tpu as pltpu


# ---------------------------------------------------------------------------
# Fused kernel: single invocation, batch folded into rows (N = B*S)
# ---------------------------------------------------------------------------
def _mhsa_fused_kernel(x_ref, wqkv_ref, bqkv_ref, wout_ref, bout_ref,
                       struct_ref, maskk_ref, maskq_ref, o_ref, slab_ref):
    x = x_ref[...]                       # (N, E) f32
    N, E = x.shape
    HE = wout_ref.shape[0]               # H * E
    H = HE // E

    w_qkv = wqkv_ref[...]                # (E, 3*H*E); 1/sqrt(E) folded into Q block
    b_qkv = bqkv_ref[...]                # (1, 3*H*E)
    struct = struct_ref[...]             # (N, N) {0,1}: same-batch AND causal
    mask_k = maskk_ref[...]              # (1, N) key padding mask
    mask_q = maskq_ref[...]              # (N, 1) query padding mask (final zeroing)

    # All heads' Q/K/V for the whole batch in ONE lane-dense MXU matmul.
    qkv = jnp.dot(x, w_qkv, preferred_element_type=jnp.float32) + b_qkv  # (N, 3HE)

    # Combined validity mask: static structure & runtime padding (built once).
    valid = jnp.logical_and(struct != 0.0, mask_k != 0.0)                # (N, N)
    all_inf = jnp.logical_not(jnp.any(valid, axis=-1, keepdims=True))    # (N, 1)

    neg_inf = jnp.float32(-jnp.inf)
    zero = jnp.float32(0.0)
    contract_last = (((1,), (1,)), ((), ()))   # q @ k.T without an explicit transpose

    for h in range(H):                   # static unroll; H is small (4)
        q = qkv[:, h * E:(h + 1) * E]                        # (N, E)
        k = qkv[:, HE + h * E: HE + (h + 1) * E]             # (N, E)
        v = qkv[:, 2 * HE + h * E: 2 * HE + (h + 1) * E]     # (N, E)

        s = jax.lax.dot_general(q, k, contract_last,
                                preferred_element_type=jnp.float32)      # (N, N)
        s = jnp.where(valid, s, neg_inf)
        # rows that are fully masked -> force zero attention (reference semantics)
        s_safe = jnp.where(all_inf, zero, s)

        m = jnp.max(s_safe, axis=-1, keepdims=True)
        e = jnp.exp(s_safe - m)
        denom = jnp.sum(e, axis=-1, keepdims=True)
        attn = e * pl.reciprocal(denom, approx=True)         # EUP slot
        attn = jnp.where(all_inf, zero, attn)
        # (eval mode: dropout is identity)

        # Write head output into the head-contiguous slab; one K=HE matmul later.
        slab_ref[:, h * E:(h + 1) * E] = jnp.dot(
            attn, v, preferred_element_type=jnp.float32)     # (N, E)

    # Consolidated output projection: (N, H*E) @ (H*E, E) in one MXU push.
    out = jnp.dot(slab_ref[...], wout_ref[...],
                  preferred_element_type=jnp.float32) + bout_ref[...]    # (N, E)
    o_ref[...] = out * mask_q


# ---------------------------------------------------------------------------
# One-time weight preparation (hoisted out of the per-call path)
# ---------------------------------------------------------------------------
def prepare_params(params):
    H, E, _ = params["wq"].shape
    HE = H * E
    scale = jnp.float32(1.0 / math.sqrt(E))

    def t(w):   # (H, E_out, E_in) -> (E_in, H*E_out); column block h == w[h].T
        return jnp.transpose(w, (2, 0, 1)).reshape(E, HE)

    # Fold the 1/sqrt(E) score scale into the Q weights and bias.
    w_qkv = jnp.concatenate(
        [t(params["wq"]) * scale, t(params["wk"]), t(params["wv"])], axis=1)  # (E, 3HE)
    b_qkv = jnp.concatenate(
        [params["bq"].reshape(-1) * scale,
         params["bk"].reshape(-1),
         params["bv"].reshape(-1)]).reshape(1, 3 * HE)
    w_out_t = jnp.transpose(params["w_out"])      # (H*E, E)
    b_out = params["b_out"].reshape(1, E)
    return {"w_qkv": w_qkv, "b_qkv": b_qkv, "w_out_t": w_out_t, "b_out": b_out}


def build_struct_mask(B, S):
    """Static (B*S, B*S) mask: same-batch AND causal, as f32 {0,1}."""
    idx = jnp.arange(B * S)
    same_batch = (idx[:, None] // S) == (idx[None, :] // S)
    causal = idx[None, :] <= idx[:, None]
    return jnp.logical_and(same_batch, causal).astype(jnp.float32)


# ---------------------------------------------------------------------------
# Per-call wrapper (only reshapes + one pallas_call)
# ---------------------------------------------------------------------------
@jax.jit
def multi_head_self_attention(x, mask, prepared, struct_mask):
    """x: [B,S,E] f32, mask: [B,S] f32 (0/1). Returns [B,S,E] f32."""
    B, S, E = x.shape
    N = B * S
    HE = prepared["w_out_t"].shape[0]

    x2 = x.reshape(N, E)
    mask_k = mask.reshape(1, N)
    mask_q = mask.reshape(N, 1)

    out = pl.pallas_call(
        _mhsa_fused_kernel,
        out_shape=jax.ShapeDtypeStruct((N, E), jnp.float32),
        grid=(1,),
        in_specs=[
            pl.BlockSpec((N, E), lambda i: (0, 0)),            # x (flattened)
            pl.BlockSpec((E, 3 * HE), lambda i: (0, 0)),       # W_qkv (stacked, scaled)
            pl.BlockSpec((1, 3 * HE), lambda i: (0, 0)),       # b_qkv
            pl.BlockSpec((HE, E), lambda i: (0, 0)),           # W_out^T
            pl.BlockSpec((1, E), lambda i: (0, 0)),            # b_out
            pl.BlockSpec((N, N), lambda i: (0, 0)),            # structural mask
            pl.BlockSpec((1, N), lambda i: (0, 0)),            # key padding mask
            pl.BlockSpec((N, 1), lambda i: (0, 0)),            # query padding mask
        ],
        out_specs=pl.BlockSpec((N, E), lambda i: (0, 0)),
        scratch_shapes=[pltpu.VMEM((N, HE), jnp.float32)],      # head-output slab
        compiler_params=pltpu.CompilerParams(
            dimension_semantics=("arbitrary",)),
    )(x2, prepared["w_qkv"], prepared["b_qkv"], prepared["w_out_t"],
      prepared["b_out"], struct_mask, mask_k, mask_q)

    return out.reshape(B, S, E)


# ---------------------------------------------------------------------------
# Pure-JAX reference (mirrors the PyTorch forward, eval mode)
# ---------------------------------------------------------------------------
def reference(x, mask, params):
    B, S, E = x.shape
    H = params["wq"].shape[0]
    outs = []
    for h in range(H):
        q = x @ params["wq"][h].T + params["bq"][h]
        k = x @ params["wk"][h].T + params["bk"][h]
        v = x @ params["wv"][h].T + params["bv"][h]
        scores = (q @ jnp.swapaxes(k, -1, -2)) / math.sqrt(E)
        causal = jnp.tril(jnp.ones((S, S), dtype=bool))[None]
        scores = jnp.where(causal, scores, -jnp.inf)
        scores = jnp.where(mask[:, None, :] == 0, -jnp.inf, scores)
        all_inf = jnp.all(jnp.isinf(scores), axis=-1, keepdims=True)
        scores_safe = jnp.where(all_inf, 0.0, scores)
        attn = jax.nn.softmax(scores_safe, axis=-1)
        attn = jnp.where(all_inf, 0.0, attn)
        outs.append(attn @ v)
    concat = jnp.concatenate(outs, axis=-1)
    out = concat @ params["w_out"].T + params["b_out"]
    return out * mask[..., None]


# ---------------------------------------------------------------------------
# Main
# ---------------------------------------------------------------------------
if __name__ == "__main__":
    B, S, E, H = 2, 8, 32, 4

    key = jax.random.PRNGKey(0)
    ks = jax.random.split(key, 10)

    scale = 1.0 / math.sqrt(E)
    params = {
        "wq": jax.random.uniform(ks[0], (H, E, E), jnp.float32, -scale, scale),
        "bq": jax.random.uniform(ks[1], (H, E), jnp.float32, -scale, scale),
        "wk": jax.random.uniform(ks[2], (H, E, E), jnp.float32, -scale, scale),
        "bk": jax.random.uniform(ks[3], (H, E), jnp.float32, -scale, scale),
        "wv": jax.random.uniform(ks[4], (H, E, E), jnp.float32, -scale, scale),
        "bv": jax.random.uniform(ks[5], (H, E), jnp.float32, -scale, scale),
        "w_out": jax.random.uniform(ks[6], (E, H * E), jnp.float32,
                                    -1.0 / math.sqrt(H * E), 1.0 / math.sqrt(H * E)),
        "b_out": jax.random.uniform(ks[7], (E,), jnp.float32,
                                    -1.0 / math.sqrt(H * E), 1.0 / math.sqrt(H * E)),
    }

    x = jax.random.normal(ks[8], (B, S, E), jnp.float32)
    # padding mask: batch 0 has a masked tail; batch 1 has its first token
    # masked (exercises the all -inf row path of the reference).
    mask = jnp.ones((B, S), jnp.float32)
    mask = mask.at[0, 6:].set(0.0)
    mask = mask.at[1, 0].set(0.0)

    # One-time init-side preparation (amortized across forward calls).
    prepared = prepare_params(params)
    struct_mask = build_struct_mask(B, S)

    out = multi_head_self_attention(x, mask, prepared, struct_mask)
    out = jax.block_until_ready(out)

    ref = reference(x, mask, params)
    assert out.shape == (B, S, E)
    # Tolerance slightly looser than 1e-4 because of the approx (EUP) reciprocal
    # in the softmax normalization.
    assert jnp.allclose(out, ref, atol=2e-3, rtol=2e-3), (
        f"max abs diff {jnp.max(jnp.abs(out - ref))}")

    print("KERNEL_OK")
</pallas_src>

<mosaic_0001>
module attributes {stable_mosaic.version = 11 : i64} {
  func.func @_mhsa_fused_kernel(%arg0: i32, %arg1: memref<16x32xf32, #tpu.memory_space<vmem>>, %arg2: memref<32x384xf32, #tpu.memory_space<vmem>>, %arg3: memref<1x384xf32, #tpu.memory_space<vmem>>, %arg4: memref<128x32xf32, #tpu.memory_space<vmem>>, %arg5: memref<1x32xf32, #tpu.memory_space<vmem>>, %arg6: memref<16x16xf32, #tpu.memory_space<vmem>>, %arg7: memref<1x16xf32, #tpu.memory_space<vmem>>, %arg8: memref<16x1xf32, #tpu.memory_space<vmem>>, %arg9: memref<16x32xf32, #tpu.memory_space<vmem>>, %arg10: memref<16x128xf32, #tpu.memory_space<vmem>>) attributes {dimension_semantics = [#tpu.dimension_semantics<arbitrary>], iteration_bounds = array<i64: 1>, scalar_prefetch = 0 : i64, scratch_operands = 1 : i64, tpu.core_type = #tpu.core_type<tc>, window_params = [{pipeline_mode = #tpu.pipeline_mode<synchronous>, transform_indices = @transform_0, window_bounds = array<i64: 16, 32>}, {pipeline_mode = #tpu.pipeline_mode<synchronous>, transform_indices = @transform_1, window_bounds = array<i64: 32, 384>}, {pipeline_mode = #tpu.pipeline_mode<synchronous>, transform_indices = @transform_2, window_bounds = array<i64: 1, 384>}, {pipeline_mode = #tpu.pipeline_mode<synchronous>, transform_indices = @transform_3, window_bounds = array<i64: 128, 32>}, {pipeline_mode = #tpu.pipeline_mode<synchronous>, transform_indices = @transform_4, window_bounds = array<i64: 1, 32>}, {pipeline_mode = #tpu.pipeline_mode<synchronous>, transform_indices = @transform_5, window_bounds = array<i64: 16, 16>}, {pipeline_mode = #tpu.pipeline_mode<synchronous>, transform_indices = @transform_6, window_bounds = array<i64: 1, 16>}, {pipeline_mode = #tpu.pipeline_mode<synchronous>, transform_indices = @transform_7, window_bounds = array<i64: 16, 1>}, {pipeline_mode = #tpu.pipeline_mode<synchronous>, transform_indices = @transform_8, window_bounds = array<i64: 16, 32>}]} {
    %c0 = arith.constant 0 : index
    %c0_0 = arith.constant 0 : index
    %0 = vector.load %arg1[%c0, %c0_0] : memref<16x32xf32, #tpu.memory_space<vmem>>, vector<16x32xf32>
    %c0_1 = arith.constant 0 : index
    %c0_2 = arith.constant 0 : index
    %1 = vector.load %arg2[%c0_1, %c0_2] : memref<32x384xf32, #tpu.memory_space<vmem>>, vector<32x384xf32>
    %c0_3 = arith.constant 0 : index
    %c0_4 = arith.constant 0 : index
    %2 = vector.load %arg3[%c0_3, %c0_4] : memref<1x384xf32, #tpu.memory_space<vmem>>, vector<1x384xf32>
    %c0_5 = arith.constant 0 : index
    %c0_6 = arith.constant 0 : index
    %3 = vector.load %arg6[%c0_5, %c0_6] : memref<16x16xf32, #tpu.memory_space<vmem>>, vector<16x16xf32>
    %c0_7 = arith.constant 0 : index
    %c0_8 = arith.constant 0 : index
    %4 = vector.load %arg7[%c0_7, %c0_8] : memref<1x16xf32, #tpu.memory_space<vmem>>, vector<1x16xf32>
    %c0_9 = arith.constant 0 : index
    %c0_10 = arith.constant 0 : index
    %5 = vector.load %arg8[%c0_9, %c0_10] : memref<16x1xf32, #tpu.memory_space<vmem>>, vector<16x1xf32>
    %cst = arith.constant dense<0.000000e+00> : vector<16x384xf32>
    %6 = tpu.matmul %0, %1, %cst {dimension_numbers = #tpu.dot_dimension_numbers<[1], [0], [0], [1], [0, 0, 1, 1], [], []>} : vector<16x32xf32>, vector<32x384xf32>, vector<16x384xf32> -> vector<16x384xf32>
    %7 = vector.broadcast %2 : vector<1x384xf32> to vector<16x384xf32>
    %8 = arith.addf %6, %7 : vector<16x384xf32>
    %cst_11 = arith.constant 0.000000e+00 : f32
    %9 = vector.broadcast %cst_11 : f32 to vector<16x16xf32>
    %10 = arith.cmpf one, %3, %9 : vector<16x16xf32>
    %cst_12 = arith.constant 0.000000e+00 : f32
    %11 = vector.broadcast %cst_12 : f32 to vector<1x16xf32>
    %12 = arith.cmpf one, %4, %11 : vector<1x16xf32>
    %13 = vector.broadcast %12 : vector<1x16xi1> to vector<16x16xi1>
    %14 = arith.andi %10, %13 : vector<16x16xi1>
    %cst_13 = arith.constant 1.000000e+00 : f32
    %cst_14 = arith.constant 0.000000e+00 : f32
    %15 = vector.broadcast %cst_13 : f32 to vector<16x16xf32>
    %16 = vector.broadcast %cst_14 : f32 to vector<16x16xf32>
    %17 = arith.select %14, %15, %16 : vector<16x16xi1>, vector<16x16xf32>
    %cst_15 = arith.constant dense<0xFF800000> : vector<16xf32>
    %18 = vector.multi_reduction <maximumf>, %17, %cst_15 [1] : vector<16x16xf32> to vector<16xf32>
    %cst_16 = arith.constant 0.000000e+00 : f32
    %19 = vector.broadcast %cst_16 : f32 to vector<16xf32>
    %20 = arith.cmpf ogt, %18, %19 : vector<16xf32>
    %21 = vector.shape_cast %20 : vector<16xi1> to vector<16x1xi1>
    %cst_17 = arith.constant dense<true> : vector<16x1xi1>
    %22 = arith.xori %21, %cst_17 : vector<16x1xi1>
    %23 = vector.extract_strided_slice %8 {offsets = [0, 0], sizes = [16, 32], strides = [1, 1]} : vector<16x384xf32> to vector<16x32xf32>
    %24 = vector.extract_strided_slice %8 {offsets = [0, 128], sizes = [16, 32], strides = [1, 1]} : vector<16x384xf32> to vector<16x32xf32>
    %25 = vector.extract_strided_slice %8 {offsets = [0, 256], sizes = [16, 32], strides = [1, 1]} : vector<16x384xf32> to vector<16x32xf32>
    %cst_18 = arith.constant dense<0.000000e+00> : vector<16x16xf32>
    %26 = tpu.matmul %23, %24, %cst_18 {dimension_numbers = #tpu.dot_dimension_numbers<[1], [1], [0], [0], [0, 0, 1, 0], [], []>} : vector<16x32xf32>, vector<16x32xf32>, vector<16x16xf32> -> vector<16x16xf32>
    %cst_19 = arith.constant 0xFF800000 : f32
    %27 = vector.broadcast %cst_19 : f32 to vector<16x16xf32>
    %28 = arith.select %14, %26, %27 : vector<16x16xi1>, vector<16x16xf32>
    %cst_20 = arith.constant 0.000000e+00 : f32
    %29 = vector.shape_cast %22 : vector<16x1xi1> to vector<16x1xi1>
    %30 = vector.broadcast %29 : vector<16x1xi1> to vector<16x16xi1>
    %31 = vector.broadcast %cst_20 : f32 to vector<16x16xf32>
    %32 = arith.select %30, %31, %28 : vector<16x16xi1>, vector<16x16xf32>
    %cst_21 = arith.constant dense<0xFF800000> : vector<16xf32>
    %33 = vector.multi_reduction <maximumf>, %32, %cst_21 [1] : vector<16x16xf32> to vector<16xf32>
    %34 = vector.shape_cast %33 : vector<16xf32> to vector<16x1xf32>
    %35 = vector.broadcast %34 : vector<16x1xf32> to vector<16x16xf32>
    %36 = arith.subf %32, %35 : vector<16x16xf32>
    %37 = math.exp %36 : vector<16x16xf32>
    %cst_22 = arith.constant dense<0.000000e+00> : vector<16xf32>
    %38 = vector.multi_reduction <add>, %37, %cst_22 [1] : vector<16x16xf32> to vector<16xf32>
    %39 = vector.shape_cast %38 : vector<16xf32> to vector<16x1xf32>
    %40 = tpu.reciprocal %39 {approx = true} : vector<16x1xf32> -> vector<16x1xf32>
    %41 = vector.broadcast %40 : vector<16x1xf32> to vector<16x16xf32>
    %42 = arith.mulf %37, %41 : vector<16x16xf32>
    %cst_23 = arith.constant 0.000000e+00 : f32
    %43 = vector.shape_cast %22 : vector<16x1xi1> to vector<16x1xi1>
    %44 = vector.broadcast %43 : vector<16x1xi1> to vector<16x16xi1>
    %45 = vector.broadcast %cst_23 : f32 to vector<16x16xf32>
    %46 = arith.select %44, %45, %42 : vector<16x16xi1>, vector<16x16xf32>
    %cst_24 = arith.constant dense<0.000000e+00> : vector<16x32xf32>
    %47 = tpu.matmul %46, %25, %cst_24 {dimension_numbers = #tpu.dot_dimension_numbers<[1], [0], [0], [1], [0, 0, 1, 1], [], []>} : vector<16x16xf32>, vector<16x32xf32>, vector<16x32xf32> -> vector<16x32xf32>
    %c0_25 = arith.constant 0 : index
    %c0_26 = arith.constant 0 : index
    %48 = vector.load %arg10[%c0_25, %c0_26] : memref<16x128xf32, #tpu.memory_space<vmem>>, vector<16x32xf32>
    tpu.vector_store %arg10[%c0_25, %c0_26], %47 {strides = array<i32>} : memref<16x128xf32, #tpu.memory_space<vmem>>, vector<16x32xf32>,
    %49 = vector.extract_strided_slice %8 {offsets = [0, 32], sizes = [16, 32], strides = [1, 1]} : vector<16x384xf32> to vector<16x32xf32>
    %50 = vector.extract_strided_slice %8 {offsets = [0, 160], sizes = [16, 32], strides = [1, 1]} : vector<16x384xf32> to vector<16x32xf32>
    %51 = vector.extract_strided_slice %8 {offsets = [0, 288], sizes = [16, 32], strides = [1, 1]} : vector<16x384xf32> to vector<16x32xf32>
    %cst_27 = arith.constant dense<0.000000e+00> : vector<16x16xf32>
    %52 = tpu.matmul %49, %50, %cst_27 {dimension_numbers = #tpu.dot_dimension_numbers<[1], [1], [0], [0], [0, 0, 1, 0], [], []>} : vector<16x32xf32>, vector<16x32xf32>, vector<16x16xf32> -> vector<16x16xf32>
    %cst_28 = arith.constant 0xFF800000 : f32
    %53 = vector.broadcast %cst_28 : f32 to vector<16x16xf32>
    %54 = arith.select %14, %52, %53 : vector<16x16xi1>, vector<16x16xf32>
    %cst_29 = arith.constant 0.000000e+00 : f32
    %55 = vector.shape_cast %22 : vector<16x1xi1> to vector<16x1xi1>
    %56 = vector.broadcast %55 : vector<16x1xi1> to vector<16x16xi1>
    %57 = vector.broadcast %cst_29 : f32 to vector<16x16xf32>
    %58 = arith.select %56, %57, %54 : vector<16x16xi1>, vector<16x16xf32>
    %cst_30 = arith.constant dense<0xFF800000> : vector<16xf32>
    %59 = vector.multi_reduction <maximumf>, %58, %cst_30 [1] : vector<16x16xf32> to vector<16xf32>
    %60 = vector.shape_cast %59 : vector<16xf32> to vector<16x1xf32>
    %61 = vector.broadcast %60 : vector<16x1xf32> to vector<16x16xf32>
    %62 = arith.subf %58, %61 : vector<16x16xf32>
    %63 = math.exp %62 : vector<16x16xf32>
    %cst_31 = arith.constant dense<0.000000e+00> : vector<16xf32>
    %64 = vector.multi_reduction <add>, %63, %cst_31 [1] : vector<16x16xf32> to vector<16xf32>
    %65 = vector.shape_cast %64 : vector<16xf32> to vector<16x1xf32>
    %66 = tpu.reciprocal %65 {approx = true} : vector<16x1xf32> -> vector<16x1xf32>
    %67 = vector.broadcast %66 : vector<16x1xf32> to vector<16x16xf32>
    %68 = arith.mulf %63, %67 : vector<16x16xf32>
    %cst_32 = arith.constant 0.000000e+00 : f32
    %69 = vector.shape_cast %22 : vector<16x1xi1> to vector<16x1xi1>
    %70 = vector.broadcast %69 : vector<16x1xi1> to vector<16x16xi1>
    %71 = vector.broadcast %cst_32 : f32 to vector<16x16xf32>
    %72 = arith.select %70, %71, %68 : vector<16x16xi1>, vector<16x16xf32>
    %cst_33 = arith.constant dense<0.000000e+00> : vector<16x32xf32>
    %73 = tpu.matmul %72, %51, %cst_33 {dimension_numbers = #tpu.dot_dimension_numbers<[1], [0], [0], [1], [0, 0, 1, 1], [], []>} : vector<16x16xf32>, vector<16x32xf32>, vector<16x32xf32> -> vector<16x32xf32>
    %c0_34 = arith.constant 0 : index
    %c32 = arith.constant 32 : index
    %74 = vector.load %arg10[%c0_34, %c32] : memref<16x128xf32, #tpu.memory_space<vmem>>, vector<16x32xf32>
    tpu.vector_store %arg10[%c0_34, %c32], %73 {strides = array<i32>} : memref<16x128xf32, #tpu.memory_space<vmem>>, vector<16x32xf32>,
    %75 = vector.extract_strided_slice %8 {offsets = [0, 64], sizes = [16, 32], strides = [1, 1]} : vector<16x384xf32> to vector<16x32xf32>
    %76 = vector.extract_strided_slice %8 {offsets = [0, 192], sizes = [16, 32], strides = [1, 1]} : vector<16x384xf32> to vector<16x32xf32>
    %77 = vector.extract_strided_slice %8 {offsets = [0, 320], sizes = [16, 32], strides = [1, 1]} : vector<16x384xf32> to vector<16x32xf32>
    %cst_35 = arith.constant dense<0.000000e+00> : vector<16x16xf32>
    %78 = tpu.matmul %75, %76, %cst_35 {dimension_numbers = #tpu.dot_dimension_numbers<[1], [1], [0], [0], [0, 0, 1, 0], [], []>} : vector<16x32xf32>, vector<16x32xf32>, vector<16x16xf32> -> vector<16x16xf32>
    %cst_36 = arith.constant 0xFF800000 : f32
    %79 = vector.broadcast %cst_36 : f32 to vector<16x16xf32>
    %80 = arith.select %14, %78, %79 : vector<16x16xi1>, vector<16x16xf32>
    %cst_37 = arith.constant 0.000000e+00 : f32
    %81 = vector.shape_cast %22 : vector<16x1xi1> to vector<16x1xi1>
    %82 = vector.broadcast %81 : vector<16x1xi1> to vector<16x16xi1>
    %83 = vector.broadcast %cst_37 : f32 to vector<16x16xf32>
    %84 = arith.select %82, %83, %80 : vector<16x16xi1>, vector<16x16xf32>
    %cst_38 = arith.constant dense<0xFF800000> : vector<16xf32>
    %85 = vector.multi_reduction <maximumf>, %84, %cst_38 [1] : vector<16x16xf32> to vector<16xf32>
    %86 = vector.shape_cast %85 : vector<16xf32> to vector<16x1xf32>
    %87 = vector.broadcast %86 : vector<16x1xf32> to vector<16x16xf32>
    %88 = arith.subf %84, %87 : vector<16x16xf32>
    %89 = math.exp %88 : vector<16x16xf32>
    %cst_39 = arith.constant dense<0.000000e+00> : vector<16xf32>
    %90 = vector.multi_reduction <add>, %89, %cst_39 [1] : vector<16x16xf32> to vector<16xf32>
    %91 = vector.shape_cast %90 : vector<16xf32> to vector<16x1xf32>
    %92 = tpu.reciprocal %91 {approx = true} : vector<16x1xf32> -> vector<16x1xf32>
    %93 = vector.broadcast %92 : vector<16x1xf32> to vector<16x16xf32>
    %94 = arith.mulf %89, %93 : vector<16x16xf32>
    %cst_40 = arith.constant 0.000000e+00 : f32
    %95 = vector.shape_cast %22 : vector<16x1xi1> to vector<16x1xi1>
    %96 = vector.broadcast %95 : vector<16x1xi1> to vector<16x16xi1>
    %97 = vector.broadcast %cst_40 : f32 to vector<16x16xf32>
    %98 = arith.select %96, %97, %94 : vector<16x16xi1>, vector<16x16xf32>
    %cst_41 = arith.constant dense<0.000000e+00> : vector<16x32xf32>
    %99 = tpu.matmul %98, %77, %cst_41 {dimension_numbers = #tpu.dot_dimension_numbers<[1], [0], [0], [1], [0, 0, 1, 1], [], []>} : vector<16x16xf32>, vector<16x32xf32>, vector<16x32xf32> -> vector<16x32xf32>
    %c0_42 = arith.constant 0 : index
    %c64 = arith.constant 64 : index
    %100 = vector.load %arg10[%c0_42, %c64] : memref<16x128xf32, #tpu.memory_space<vmem>>, vector<16x32xf32>
    tpu.vector_store %arg10[%c0_42, %c64], %99 {strides = array<i32>} : memref<16x128xf32, #tpu.memory_space<vmem>>, vector<16x32xf32>,
    %101 = vector.extract_strided_slice %8 {offsets = [0, 96], sizes = [16, 32], strides = [1, 1]} : vector<16x384xf32> to vector<16x32xf32>
    %102 = vector.extract_strided_slice %8 {offsets = [0, 224], sizes = [16, 32], strides = [1, 1]} : vector<16x384xf32> to vector<16x32xf32>
    %103 = vector.extract_strided_slice %8 {offsets = [0, 352], sizes = [16, 32], strides = [1, 1]} : vector<16x384xf32> to vector<16x32xf32>
    %cst_43 = arith.constant dense<0.000000e+00> : vector<16x16xf32>
    %104 = tpu.matmul %101, %102, %cst_43 {dimension_numbers = #tpu.dot_dimension_numbers<[1], [1], [0], [0], [0, 0, 1, 0], [], []>} : vector<16x32xf32>, vector<16x32xf32>, vector<16x16xf32> -> vector<16x16xf32>
    %cst_44 = arith.constant 0xFF800000 : f32
    %105 = vector.broadcast %cst_44 : f32 to vector<16x16xf32>
    %106 = arith.select %14, %104, %105 : vector<16x16xi1>, vector<16x16xf32>
    %cst_45 = arith.constant 0.000000e+00 : f32
    %107 = vector.shape_cast %22 : vector<16x1xi1> to vector<16x1xi1>
    %108 = vector.broadcast %107 : vector<16x1xi1> to vector<16x16xi1>
    %109 = vector.broadcast %cst_45 : f32 to vector<16x16xf32>
    %110 = arith.select %108, %109, %106 : vector<16x16xi1>, vector<16x16xf32>
    %cst_46 = arith.constant dense<0xFF800000> : vector<16xf32>
    %111 = vector.multi_reduction <maximumf>, %110, %cst_46 [1] : vector<16x16xf32> to vector<16xf32>
    %112 = vector.shape_cast %111 : vector<16xf32> to vector<16x1xf32>
    %113 = vector.broadcast %112 : vector<16x1xf32> to vector<16x16xf32>
    %114 = arith.subf %110, %113 : vector<16x16xf32>
    %115 = math.exp %114 : vector<16x16xf32>
    %cst_47 = arith.constant dense<0.000000e+00> : vector<16xf32>
    %116 = vector.multi_reduction <add>, %115, %cst_47 [1] : vector<16x16xf32> to vector<16xf32>
    %117 = vector.shape_cast %116 : vector<16xf32> to vector<16x1xf32>
    %118 = tpu.reciprocal %117 {approx = true} : vector<16x1xf32> -> vector<16x1xf32>
    %119 = vector.broadcast %118 : vector<16x1xf32> to vector<16x16xf32>
    %120 = arith.mulf %115, %119 : vector<16x16xf32>
    %cst_48 = arith.constant 0.000000e+00 : f32
    %121 = vector.shape_cast %22 : vector<16x1xi1> to vector<16x1xi1>
    %122 = vector.broadcast %121 : vector<16x1xi1> to vector<16x16xi1>
    %123 = vector.broadcast %cst_48 : f32 to vector<16x16xf32>
    %124 = arith.select %122, %123, %120 : vector<16x16xi1>, vector<16x16xf32>
    %cst_49 = arith.constant dense<0.000000e+00> : vector<16x32xf32>
    %125 = tpu.matmul %124, %103, %cst_49 {dimension_numbers = #tpu.dot_dimension_numbers<[1], [0], [0], [1], [0, 0, 1, 1], [], []>} : vector<16x16xf32>, vector<16x32xf32>, vector<16x32xf32> -> vector<16x32xf32>
    %c0_50 = arith.constant 0 : index
    %c96 = arith.constant 96 : index
    %126 = vector.load %arg10[%c0_50, %c96] : memref<16x128xf32, #tpu.memory_space<vmem>>, vector<16x32xf32>
    tpu.vector_store %arg10[%c0_50, %c96], %125 {strides = array<i32>} : memref<16x128xf32, #tpu.memory_space<vmem>>, vector<16x32xf32>,
    %c0_51 = arith.constant 0 : index
    %c0_52 = arith.constant 0 : index
    %127 = vector.load %arg10[%c0_51, %c0_52] : memref<16x128xf32, #tpu.memory_space<vmem>>, vector<16x128xf32>
    %c0_53 = arith.constant 0 : index
    %c0_54 = arith.constant 0 : index
    %128 = vector.load %arg4[%c0_53, %c0_54] : memref<128x32xf32, #tpu.memory_space<vmem>>, vector<128x32xf32>
    %cst_55 = arith.constant dense<0.000000e+00> : vector<16x32xf32>
    %129 = tpu.matmul %127, %128, %cst_55 {dimension_numbers = #tpu.dot_dimension_numbers<[1], [0], [0], [1], [0, 0, 1, 1], [], []>} : vector<16x128xf32>, vector<128x32xf32>, vector<16x32xf32> -> vector<16x32xf32>
    %c0_56 = arith.constant 0 : index
    %c0_57 = arith.constant 0 : index
    %130 = vector.load %arg5[%c0_56, %c0_57] : memref<1x32xf32, #tpu.memory_space<vmem>>, vector<1x32xf32>
    %131 = vector.broadcast %130 : vector<1x32xf32> to vector<16x32xf32>
    %132 = arith.addf %129, %131 : vector<16x32xf32>
    %133 = vector.broadcast %5 : vector<16x1xf32> to vector<16x32xf32>
    %134 = arith.mulf %132, %133 : vector<16x32xf32>
    %c0_58 = arith.constant 0 : index
    %c0_59 = arith.constant 0 : index
    %135 = vector.load %arg9[%c0_58, %c0_59] : memref<16x32xf32, #tpu.memory_space<vmem>>, vector<16x32xf32>
    tpu.vector_store %arg9[%c0_58, %c0_59], %134 {strides = array<i32>} : memref<16x32xf32, #tpu.memory_space<vmem>>, vector<16x32xf32>,
    return
  }
  func.func @transform_0(%arg0: i32) -> (i32, i32) {
    %c0_i32 = arith.constant 0 : i32
    %c0_i32_0 = arith.constant 0 : i32
    %c0_i32_1 = arith.constant 0 : i32
    return %c0_i32, %c0_i32_0 : i32, i32
  }
  func.func @transform_1(%arg0: i32) -> (i32, i32) {
    %c0_i32 = arith.constant 0 : i32
    %c0_i32_0 = arith.constant 0 : i32
    %c0_i32_1 = arith.constant 0 : i32
    return %c0_i32, %c0_i32_0 : i32, i32
  }
  func.func @transform_2(%arg0: i32) -> (i32, i32) {
    %c0_i32 = arith.constant 0 : i32
    %c0_i32_0 = arith.constant 0 : i32
    %c0_i32_1 = arith.constant 0 : i32
    return %c0_i32, %c0_i32_0 : i32, i32
  }
  func.func @transform_3(%arg0: i32) -> (i32, i32) {
    %c0_i32 = arith.constant 0 : i32
    %c0_i32_0 = arith.constant 0 : i32
    %c0_i32_1 = arith.constant 0 : i32
    return %c0_i32, %c0_i32_0 : i32, i32
  }
  func.func @transform_4(%arg0: i32) -> (i32, i32) {
    %c0_i32 = arith.constant 0 : i32
    %c0_i32_0 = arith.constant 0 : i32
    %c0_i32_1 = arith.constant 0 : i32
    return %c0_i32, %c0_i32_0 : i32, i32
  }
  func.func @transform_5(%arg0: i32) -> (i32, i32) {
    %c0_i32 = arith.constant 0 : i32
    %c0_i32_0 = arith.constant 0 : i32
    %c0_i32_1 = arith.constant 0 : i32
    return %c0_i32, %c0_i32_0 : i32, i32
  }
  func.func @transform_6(%arg0: i32) -> (i32, i32) {
    %c0_i32 = arith.constant 0 : i32
    %c0_i32_0 = arith.constant 0 : i32
    %c0_i32_1 = arith.constant 0 : i32
    return %c0_i32, %c0_i32_0 : i32, i32
  }
  func.func @transform_7(%arg0: i32) -> (i32, i32) {
    %c0_i32 = arith.constant 0 : i32
    %c0_i32_0 = arith.constant 0 : i32
    %c0_i32_1 = arith.constant 0 : i32
    return %c0_i32, %c0_i32_0 : i32, i32
  }
  func.func @transform_8(%arg0: i32) -> (i32, i32) {
    %c0_i32 = arith.constant 0 : i32
    %c0_i32_0 = arith.constant 0 : i32
    %c0_i32_1 = arith.constant 0 : i32
    return %c0_i32, %c0_i32_0 : i32, i32
  }
}

</mosaic_0001>

<llo_original>
// kernel: multi_head_self_attention.1
$region0: #{multi_head_self_attention.1}
  #allocation0 [shape = 'u32[]', space=smem, size = 0x4, offset = 0x4, fixed_abs, tag = 'smem constant byte address 0x4 - core index']
  #allocation1 [shape = 'u32[144,128]{1,0:T(1,128)}', space=vmem, size = 0x12000, scoped, tag = 'internal scratch']
  #allocation2 [shape = 'f32[16,128]{1,0:T(8,128)}', space=vmem, size = 0x2000, scoped, tag = 'scratch operand']
  %s0 = inlined_call_operand.vmem [shape: f32[16,32], index: 0, kind: input, shape index: {}]
  %s1 = inlined_call_operand.vmem [shape: f32[32,384], index: 1, kind: input, shape index: {}]
  %s2 = inlined_call_operand.vmem [shape: f32[1,384], index: 2, kind: input, shape index: {}]
  %s3 = inlined_call_operand.vmem [shape: f32[128,32], index: 3, kind: input, shape index: {}]
  %s4 = inlined_call_operand.vmem [shape: f32[1,32], index: 4, kind: input, shape index: {}]
  %s5 = inlined_call_operand.vmem [shape: f32[16,16], index: 5, kind: input, shape index: {}]
  %s6 = inlined_call_operand.vmem [shape: f32[1,16], index: 6, kind: input, shape index: {}]
  %s7 = inlined_call_operand.vmem [shape: f32[16,1], index: 7, kind: input, shape index: {}]
  %s8 = inlined_call_operand.hbm [shape: f32[16,32], index: 8, kind: output, shape index: {}]
  %s9 = sld [smem:[#allocation0]]
  $region42: #{multi_head_self_attention.1} parent=0
    _
  %s11 = ssub.s32 1, %s9
  %s12 = scalar_select 0, %s11, %s9
  $region1: #{multi_head_self_attention.1} parent=0
    #allocation3 [shape = 'u8[8192]{0}', space=vmem, size = 0x2000, scoped, tag = 'output window, operand 0, single buffered']
    #allocation4 [shape = 's32[1]{0}', space=sflag, size = 0x4, scoped, tag = 'scoped memory for multi_head_self_attention.1']
    %13 = vsyncpa [#allocation4], 0
    // Predicated region
    $region2: #{multi_head_self_attention.1} parent=1 // pred_check
      _
    $region3: #{multi_head_self_attention.1} parent=1 // pred_check_branch
      %15 = sbr.rel (0) target = $region5
    $region4: #{multi_head_self_attention.1} parent=1 // pred_region
      _
    $region5: #{multi_head_self_attention.1} parent=1 // pred_fallthru
      _
    // Predicated region
    $region6: #{multi_head_self_attention.1} parent=1 // pred_check
      _
    $region7: #{multi_head_self_attention.1} parent=1 // pred_check_branch
      %17 = sbr.rel (0) target = $region9
    $region8: #{multi_head_self_attention.1} parent=1 // pred_region
      _
    $region9: #{multi_head_self_attention.1} parent=1 // pred_fallthru
      _
    // Predicated region
    $region10: #{multi_head_self_attention.1} parent=1 // pred_check
      _
    $region11: #{multi_head_self_attention.1} parent=1 // pred_check_branch
      %19 = sbr.rel (0) target = $region13
    $region12: #{multi_head_self_attention.1} parent=1 // pred_region
      _
    $region13: #{multi_head_self_attention.1} parent=1 // pred_fallthru
      _
    // Predicated region
    $region14: #{multi_head_self_attention.1} parent=1 // pred_check
      _
    $region15: #{multi_head_self_attention.1} parent=1 // pred_check_branch
      %21 = sbr.rel (0) target = $region17
    $region16: #{multi_head_self_attention.1} parent=1 // pred_region
      _
    $region17: #{multi_head_self_attention.1} parent=1 // pred_fallthru
      _
    // Predicated region
    $region18: #{multi_head_self_attention.1} parent=1 // pred_check
      _
    $region19: #{multi_head_self_attention.1} parent=1 // pred_check_branch
      %23 = sbr.rel (0) target = $region21
    $region20: #{multi_head_self_attention.1} parent=1 // pred_region
      _
    $region21: #{multi_head_self_attention.1} parent=1 // pred_fallthru
      _
    // Predicated region
    $region22: #{multi_head_self_attention.1} parent=1 // pred_check
      _
    $region23: #{multi_head_self_attention.1} parent=1 // pred_check_branch
      %25 = sbr.rel (0) target = $region25
    $region24: #{multi_head_self_attention.1} parent=1 // pred_region
      _
    $region25: #{multi_head_self_attention.1} parent=1 // pred_fallthru
      _
    // Predicated region
    $region26: #{multi_head_self_attention.1} parent=1 // pred_check
      _
    $region27: #{multi_head_self_attention.1} parent=1 // pred_check_branch
      %27 = sbr.rel (0) target = $region29
    $region28: #{multi_head_self_attention.1} parent=1 // pred_region
      _
    $region29: #{multi_head_self_attention.1} parent=1 // pred_fallthru
      _
    // Predicated region
    $region30: #{multi_head_self_attention.1} parent=1 // pred_check
      _
    $region31: #{multi_head_self_attention.1} parent=1 // pred_check_branch
      %29 = sbr.rel (0) target = $region33
    $region32: #{multi_head_self_attention.1} parent=1 // pred_region
      _
    $region33: #{multi_head_self_attention.1} parent=1 // pred_fallthru
      _
    %v30 = vld [vmem:[%s0] sm:$0xff]
    %v31 = vld [vmem:[%s0 + $0x8] sm:$0xff]
    %v32 = vld [vmem:[%s1] sm:$0xff]
    %v33 = vld [vmem:[%s1 + $0x8] sm:$0xff]
    %v34 = vld [vmem:[%s1 + $0x10] sm:$0xff]
    %v35 = vld [vmem:[%s1 + $0x18] sm:$0xff]
    %v36 = vld [vmem:[%s1 + $0x20] sm:$0xff]
    %v37 = vld [vmem:[%s1 + $0x28] sm:$0xff]
    %v38 = vld [vmem:[%s1 + $0x30] sm:$0xff]
    %v39 = vld [vmem:[%s1 + $0x38] sm:$0xff]
    %v40 = vld [vmem:[%s1 + $0x40] sm:$0xff]
    %v41 = vld [vmem:[%s1 + $0x48] sm:$0xff]
    %v42 = vld [vmem:[%s1 + $0x50] sm:$0xff]
    %v43 = vld [vmem:[%s1 + $0x58] sm:$0xff]
    %v44 = vld [vmem:[%s2] sm:$0x7]
    %v45 = vld [vmem:[%s5] sm:$0xff]
    %v46 = vld [vmem:[%s5 + $0x8] sm:$0xff]
    %v47 = vld [vmem:[%s6] sm:$0x1]
    %v48 = vld [vmem:[%s7] sm:$0xff]
    %v49 = vld [vmem:[%s7 + $0x8] sm:$0xff]
    %v51 = vlaneseq
    %v52 = vshrl.u32 %v51, 7
    %v53 = vsub.s32 0, %v52
    %v54 = vrot.slane %v44, %v53
    %v55 = vlaneseq
    %v56 = vshrl.u32 %v55, 7
    %v57 = vsub.s32 1, %v56
    %v58 = vrot.slane %v44, %v57
    %v59 = vlaneseq
    %v60 = vshrl.u32 %v59, 7
    %v61 = vsub.s32 2, %v60
    %v62 = vrot.slane %v44, %v61
    %vm66 = vcmask 261120
    %v68 = vsel %vm66, %v30, 0
    %v71 = vsel %vm66, %v31, 0
    %73 = vmatprep.subr.mxu0 %v33
    %74 = vmatpush1.msra.mxu0 %v32
    %75 = vmatprep.subr.mxu0 %v36
    %76 = vmatpush1.msra.mxu0 %v35
    %77 = vmatprep.subr.mxu0 %v39
    %78 = vmatpush1.msra.mxu0 %v38
    %79 = vmatprep.subr.mxu0 %v42
    %80 = vmatpush1.msra.mxu0 %v41
    %81 = vmatprep.subr.mxu0 0.0
    %82 = vmatpush1.msra.mxu0 0.0
    %83 = vmatprep.subr.mxu0 0.0
    %84 = vmatpush1.msra.mxu0 0.0
    %85 = vmatprep.subr.mxu0 0.0
    %86 = vmatpush1.msra.mxu0 0.0
    %87 = vmatprep.subr.mxu0 0.0
    %88 = vmatpush1.msra.mxu0 0.0
    %89 = vmatprep.subr.mxu0 0.0
    %90 = vmatpush1.msra.mxu0 0.0
    %91 = vmatprep.subr.mxu0 0.0
    %92 = vmatpush1.msra.mxu0 0.0
    %93 = vmatprep.subr.mxu0 0.0
    %94 = vmatpush1.msra.mxu0 0.0
    %95 = vmatprep.subr.mxu0 0.0
    %96 = vmatpush1.msra.mxu0 0.0
    %97 = vmatprep.subr.mxu0 0.0
    %98 = vmatpush1.msra.mxu0 0.0
    %99 = vmatprep.subr.mxu0 0.0
    %100 = vmatpush1.msra.mxu0 0.0
    %101 = vmatprep.subr.mxu0 0.0
    %102 = vmatpush1.msra.mxu0 0.0
    %103 = vmatprep.subr.mxu0 0.0
    %104 = vmatpush1.msra.mxu0 0.0
    %105 = vmatprep.subr.mxu0 0.0
    %106 = vmatpush1.msra.mxu0 0.0
    %107 = vmatprep.subr.mxu0 0.0
    %108 = vmatpush1.msra.mxu0 0.0
    %109 = vmatprep.subr.mxu0 0.0
    %110 = vmatpush1.msra.mxu0 0.0
    %111 = vmatprep.subr.mxu0 0.0
    %112 = vmatpush1.msra.mxu0 0.0
    %113 = vmatprep.subr.mxu0 0.0
    %114 = vmatpush1.msra.mxu0 0.0
    %115 = vmatprep.subr.mxu0 0.0
    %116 = vmatpush1.msra.mxu0 0.0
    %117 = vmatprep.subr.mxu0 0.0
    %118 = vmatpush1.msra.mxu0 0.0
    %119 = vmatprep.subr.mxu0 0.0
    %120 = vmatpush1.msra.mxu0 0.0
    %121 = vmatprep.subr.mxu0 0.0
    %122 = vmatpush1.msra.mxu0 0.0
    %123 = vmatprep.subr.mxu0 0.0
    %124 = vmatpush1.msra.mxu0 0.0
    %125 = vmatprep.subr.mxu0 0.0
    %126 = vmatpush1.msra.mxu0 0.0
    %127 = vmatprep.subr.mxu0 0.0
    %128 = vmatpush1.msra.mxu0 0.0
    %129 = vmatprep.subr.mxu0 0.0
    %130 = vmatpush1.msra.mxu0 0.0
    %131 = vmatprep.subr.mxu0 0.0
    %132 = vmatpush1.msra.mxu0 0.0
    %133 = vmatprep.subr.mxu0 0.0
    %134 = vmatpush1.msra.mxu0 0.0
    %135 = vmatprep.subr.mxu0 0.0
    %136 = vmatpush1.msra.mxu0 0.0
    %137 = vmatprep.mubr.f32.mxu0 0.0
    %138 = vmatmul.mubr.f32.gmra.mrb[0].mxu0 %v68
    %v139 = vpop.f32.mrb[0].mxu0
    %v140 = vadd.f32 %v54, %v139
    %v141 = vpop.f32.mrb[0].mxu0
    %v142 = vadd.f32 %v58, %v141
    %143 = vmatprep.mubr.f32.mxu0 0.0
    %144 = vmatmul.mubr.f32.gmra.mrb[0].mxu0 %v71
    %v145 = vpop.f32.mrb[0].mxu0
    %v146 = vadd.f32 %v54, %v145
    %v147 = vpop.f32.mrb[0].mxu0
    %v148 = vadd.f32 %v58, %v147
    %149 = vdwg.mxu0
    %150 = vmatprep.subr.mxu0 0.0
    %151 = vmatpush1.msra.mxu0 %v34
    %152 = vmatprep.subr.mxu0 0.0
    %153 = vmatpush1.msra.mxu0 %v37
    %154 = vmatprep.subr.mxu0 0.0
    %155 = vmatpush1.msra.mxu0 %v40
    %156 = vmatprep.subr.mxu0 0.0
    %157 = vmatpush1.msra.mxu0 %v43
    %158 = vmatprep.subr.mxu0 0.0
    %159 = vmatpush1.msra.mxu0 0.0
    %160 = vmatprep.subr.mxu0 0.0
    %161 = vmatpush1.msra.mxu0 0.0
    %162 = vmatprep.subr.mxu0 0.0
    %163 = vmatpush1.msra.mxu0 0.0
    %164 = vmatprep.subr.mxu0 0.0
    %165 = vmatpush1.msra.mxu0 0.0
    %166 = vmatprep.subr.mxu0 0.0
    %167 = vmatpush1.msra.mxu0 0.0
    %168 = vmatprep.subr.mxu0 0.0
    %169 = vmatpush1.msra.mxu0 0.0
    %170 = vmatprep.subr.mxu0 0.0
    %171 = vmatpush1.msra.mxu0 0.0
    %172 = vmatprep.subr.mxu0 0.0
    %173 = vmatpush1.msra.mxu0 0.0
    %174 = vmatprep.subr.mxu0 0.0
    %175 = vmatpush1.msra.mxu0 0.0
    %176 = vmatprep.subr.mxu0 0.0
    %177 = vmatpush1.msra.mxu0 0.0
    %178 = vmatprep.subr.mxu0 0.0
    %179 = vmatpush1.msra.mxu0 0.0
    %180 = vmatprep.subr.mxu0 0.0
    %181 = vmatpush1.msra.mxu0 0.0
    %182 = vmatprep.subr.mxu0 0.0
    %183 = vmatpush1.msra.mxu0 0.0
    %184 = vmatprep.subr.mxu0 0.0
    %185 = vmatpush1.msra.mxu0 0.0
    %186 = vmatprep.subr.mxu0 0.0
    %187 = vmatpush1.msra.mxu0 0.0
    %188 = vmatprep.subr.mxu0 0.0
    %189 = vmatpush1.msra.mxu0 0.0
    %190 = vmatprep.subr.mxu0 0.0
    %191 = vmatpush1.msra.mxu0 0.0
    %192 = vmatprep.subr.mxu0 0.0
    %193 = vmatpush1.msra.mxu0 0.0
    %194 = vmatprep.subr.mxu0 0.0
    %195 = vmatpush1.msra.mxu0 0.0
    %196 = vmatprep.subr.mxu0 0.0
    %197 = vmatpush1.msra.mxu0 0.0
    %198 = vmatprep.subr.mxu0 0.0
    %199 = vmatpush1.msra.mxu0 0.0
    %200 = vmatprep.subr.mxu0 0.0
    %201 = vmatpush1.msra.mxu0 0.0
    %202 = vmatprep.subr.mxu0 0.0
    %203 = vmatpush1.msra.mxu0 0.0
    %204 = vmatprep.subr.mxu0 0.0
    %205 = vmatpush1.msra.mxu0 0.0
    %206 = vmatprep.subr.mxu0 0.0
    %207 = vmatpush1.msra.mxu0 0.0
    %208 = vmatprep.subr.mxu0 0.0
    %209 = vmatpush1.msra.mxu0 0.0
    %210 = vmatprep.subr.mxu0 0.0
    %211 = vmatpush1.msra.mxu0 0.0
    %212 = vmatprep.subr.mxu0 0.0
    %213 = vmatpush1.msra.mxu0 0.0
    %214 = vmatprep.mubr.f32.mxu0 0.0
    %215 = vmatmul.mubr.f32.gmra.mrb[0].mxu0 %v68
    %v216 = vpop.f32.mrb[0].mxu0
    %v217 = vadd.f32 %v62, %v216
    %v218 = vpop.f32.mrb[0].mxu0
    %219 = vmatprep.mubr.f32.mxu0 0.0
    %220 = vmatmul.mubr.f32.gmra.mrb[0].mxu0 %v71
    %v221 = vpop.f32.mrb[0].mxu0
    %v222 = vadd.f32 %v62, %v221
    %v223 = vpop.f32.mrb[0].mxu0
    %224 = vdwg.mxu0
    %vm225 = vcmp.ne.f32.partialorder %v45, 0.0
    %vm226 = vcmp.ne.f32.partialorder %v46, 0.0
    %vm227 = vcmp.ne.f32.partialorder %v47, 0.0
    %v228 = vsel %vm227, 1, 0
    %v229 = vlaneseq
    %v230 = vshrl.u32 %v229, 7
    %v231 = vsub.s32 0, %v230
    %v232 = vrot.slane %v228, %v231
    %vm233 = vcmp.eq.s32.totalorder %v232, 1
    %vm234 = vmand %vm225, %vm233
    %vm235 = vmand %vm226, %vm233
    %v236 = vsel %vm234, 1.0, 0.0
    %v237 = vsel %vm235, 1.0, 0.0
    %vm238 = vcmask 130048
    %v239 = vsel %vm238, %v236, -inf
    %240 = vmax.xlane.f32.xlu0 %v239
    %v241 = vpop.xlane.xlu0 %240
    %v242 = vsel %vm238, %v237, -inf
    %243 = vmax.xlane.f32.xlu0 %v242
    %v244 = vpop.xlane.xlu0 %243
    %vm245 = vcmp.gt.f32.partialorder %v241, 0.0
    %vm246 = vcmp.gt.f32.partialorder %v244, 0.0
    %vm247 = vmxor %vm245, 1
    %vm248 = vmxor %vm246, 1
    %v250 = vsel %vm66, %v140, 0
    %v253 = vsel %vm66, %v146, 0
    %v256 = vsel %vm66, %v142, 0
    %v259 = vsel %vm66, %v148, 0
    %261 = vmatprep.subr.mxu0 0.0
    %262 = vmatpush1.xpose.msra.mxu0 %v256
    %263 = vmatprep.subr.mxu0 0.0
    %264 = vmatpush1.xpose.msra.mxu0 %v259
    %265 = vmatprep.subr.mxu0 0.0
    %266 = vmatpush1.xpose.msra.mxu0 0.0
    %267 = vmatprep.subr.mxu0 0.0
    %268 = vmatpush1.xpose.msra.mxu0 0.0
    %269 = vmatprep.subr.mxu0 0.0
    %270 = vmatpush1.xpose.msra.mxu0 0.0
    %271 = vmatprep.subr.mxu0 0.0
    %272 = vmatpush1.xpose.msra.mxu0 0.0
    %273 = vmatprep.subr.mxu0 0.0
    %274 = vmatpush1.xpose.msra.mxu0 0.0
    %275 = vmatprep.subr.mxu0 0.0
    %276 = vmatpush1.xpose.msra.mxu0 0.0
    %277 = vmatprep.subr.mxu0 0.0
    %278 = vmatpush1.xpose.msra.mxu0 0.0
    %279 = vmatprep.subr.mxu0 0.0
    %280 = vmatpush1.xpose.msra.mxu0 0.0
    %281 = vmatprep.subr.mxu0 0.0
    %282 = vmatpush1.xpose.msra.mxu0 0.0
    %283 = vmatprep.subr.mxu0 0.0
    %284 = vmatpush1.xpose.msra.mxu0 0.0
    %285 = vmatprep.subr.mxu0 0.0
    %286 = vmatpush1.xpose.msra.mxu0 0.0
    %287 = vmatprep.subr.mxu0 0.0
    %288 = vmatpush1.xpose.msra.mxu0 0.0
    %289 = vmatprep.subr.mxu0 0.0
    %290 = vmatpush1.xpose.msra.mxu0 0.0
    %291 = vmatprep.subr.mxu0 0.0
    %292 = vmatpush1.xpose.msra.mxu0 0.0
    %293 = vmatprep.subr.mxu0 0.0
    %294 = vmatpush1.xpose.msra.mxu0 0.0
    %295 = vmatprep.subr.mxu0 0.0
    %296 = vmatpush1.xpose.msra.mxu0 0.0
    %297 = vmatprep.subr.mxu0 0.0
    %298 = vmatpush1.xpose.msra.mxu0 0.0
    %299 = vmatprep.subr.mxu0 0.0
    %300 = vmatpush1.xpose.msra.mxu0 0.0
    %301 = vmatprep.subr.mxu0 0.0
    %302 = vmatpush1.xpose.msra.mxu0 0.0
    %303 = vmatprep.subr.mxu0 0.0
    %304 = vmatpush1.xpose.msra.mxu0 0.0
    %305 = vmatprep.subr.mxu0 0.0
    %306 = vmatpush1.xpose.msra.mxu0 0.0
    %307 = vmatprep.subr.mxu0 0.0
    %308 = vmatpush1.xpose.msra.mxu0 0.0
    %309 = vmatprep.subr.mxu0 0.0
    %310 = vmatpush1.xpose.msra.mxu0 0.0
    %311 = vmatprep.subr.mxu0 0.0
    %312 = vmatpush1.xpose.msra.mxu0 0.0
    %313 = vmatprep.subr.mxu0 0.0
    %314 = vmatpush1.xpose.msra.mxu0 0.0
    %315 = vmatprep.subr.mxu0 0.0
    %316 = vmatpush1.xpose.msra.mxu0 0.0
    %317 = vmatprep.subr.mxu0 0.0
    %318 = vmatpush1.xpose.msra.mxu0 0.0
    %319 = vmatprep.subr.mxu0 0.0
    %320 = vmatpush1.xpose.msra.mxu0 0.0
    %321 = vmatprep.subr.mxu0 0.0
    %322 = vmatpush1.xpose.msra.mxu0 0.0
    %323 = vmatprep.subr.mxu0 0.0
    %324 = vmatpush1.xpose.msra.mxu0 0.0
    %325 = vmatprep.mubr.f32.mxu0 0.0
    %326 = vmatmul.mubr.f32.gmra.mrb[0].mxu0 %v250
    %v327 = vpop.f32.mrb[0].mxu0
    %v328 = vadd.f32 0.0, %v327
    %v329 = vpop.f32.mrb[0].mxu0
    %330 = vmatprep.mubr.f32.mxu0 0.0
    %331 = vmatmul.mubr.f32.gmra.mrb[0].mxu0 %v253
    %v332 = vpop.f32.mrb[0].mxu0
    %v333 = vadd.f32 0.0, %v332
    %v334 = vpop.f32.mrb[0].mxu0
    %335 = vdwg.mxu0
    %v336 = vsel %vm234, %v328, -inf
    %v337 = vsel %vm235, %v333, -inf
    %v338 = vsel %vm247, 1, 0
    %v339 = vsel %vm248, 1, 0
    %vm340 = vcmp.eq.s32.totalorder %v338, 1
    %vm341 = vcmp.eq.s32.totalorder %v339, 1
    %v342 = vsel %vm340, 0.0, %v336
    %v343 = vsel %vm341, 0.0, %v337
    %v344 = vsel %vm238, %v342, -inf
    %345 = vmax.xlane.f32.xlu0 %v344
    %v346 = vpop.xlane.xlu0 %345
    %v347 = vsel %vm238, %v343, -inf
    %348 = vmax.xlane.f32.xlu0 %v347
    %v349 = vpop.xlane.xlu0 %348
    %v350 = vsub.f32 %v342, %v346
    %v351 = vsub.f32 %v343, %v349
    %v352 = vmul.f32 %v350, 1.442695
    %v353 = vpow.pop %v352
    %v354 = vmul.f32 %v351, 1.442695
    %v355 = vpow.pop %v354
    %v356 = vsel %vm238, %v353, 0.0
    %357 = vadd.xlane.f32.xlu0 %v356
    %v358 = vpop.xlane.xlu0 %357
    %v359 = vsel %vm238, %v355, 0.0
    %360 = vadd.xlane.f32.xlu0 %v359
    %v361 = vpop.xlane.xlu0 %360
    %v362 = vrcp.pop %v358
    %v363 = vrcp.pop %v361
    %v364 = vmul.f32 %v353, %v362
    %v365 = vmul.f32 %v355, %v363
    %v366 = vsel %vm340, 0.0, %v364
    %v367 = vsel %vm341, 0.0, %v365
    %v369 = vsel %vm238, %v366, 0
    %v372 = vsel %vm238, %v367, 0
    %374 = vmatprep.subr.mxu0 0.0
    %375 = vmatpush1.msra.mxu0 %v217
    %376 = vmatprep.subr.mxu0 0.0
    %377 = vmatpush1.msra.mxu0 %v222
    %378 = vmatprep.subr.mxu0 0.0
    %379 = vmatpush1.msra.mxu0 0.0
    %380 = vmatprep.subr.mxu0 0.0
    %381 = vmatpush1.msra.mxu0 0.0
    %382 = vmatprep.subr.mxu0 0.0
    %383 = vmatpush1.msra.mxu0 0.0
    %384 = vmatprep.subr.mxu0 0.0
    %385 = vmatpush1.msra.mxu0 0.0
    %386 = vmatprep.subr.mxu0 0.0
    %387 = vmatpush1.msra.mxu0 0.0
    %388 = vmatprep.subr.mxu0 0.0
    %389 = vmatpush1.msra.mxu0 0.0
    %390 = vmatprep.subr.mxu0 0.0
    %391 = vmatpush1.msra.mxu0 0.0
    %392 = vmatprep.subr.mxu0 0.0
    %393 = vmatpush1.msra.mxu0 0.0
    %394 = vmatprep.subr.mxu0 0.0
    %395 = vmatpush1.msra.mxu0 0.0
    %396 = vmatprep.subr.mxu0 0.0
    %397 = vmatpush1.msra.mxu0 0.0
    %398 = vmatprep.subr.mxu0 0.0
    %399 = vmatpush1.msra.mxu0 0.0
    %400 = vmatprep.subr.mxu0 0.0
    %401 = vmatpush1.msra.mxu0 0.0
    %402 = vmatprep.subr.mxu0 0.0
    %403 = vmatpush1.msra.mxu0 0.0
    %404 = vmatprep.subr.mxu0 0.0
    %405 = vmatpush1.msra.mxu0 0.0
    %406 = vmatprep.subr.mxu0 0.0
    %407 = vmatpush1.msra.mxu0 0.0
    %408 = vmatprep.subr.mxu0 0.0
    %409 = vmatpush1.msra.mxu0 0.0
    %410 = vmatprep.subr.mxu0 0.0
    %411 = vmatpush1.msra.mxu0 0.0
    %412 = vmatprep.subr.mxu0 0.0
    %413 = vmatpush1.msra.mxu0 0.0
    %414 = vmatprep.subr.mxu0 0.0
    %415 = vmatpush1.msra.mxu0 0.0
    %416 = vmatprep.subr.mxu0 0.0
    %417 = vmatpush1.msra.mxu0 0.0
    %418 = vmatprep.subr.mxu0 0.0
    %419 = vmatpush1.msra.mxu0 0.0
    %420 = vmatprep.subr.mxu0 0.0
    %421 = vmatpush1.msra.mxu0 0.0
    %422 = vmatprep.subr.mxu0 0.0
    %423 = vmatpush1.msra.mxu0 0.0
    %424 = vmatprep.subr.mxu0 0.0
    %425 = vmatpush1.msra.mxu0 0.0
    %426 = vmatprep.subr.mxu0 0.0
    %427 = vmatpush1.msra.mxu0 0.0
    %428 = vmatprep.subr.mxu0 0.0
    %429 = vmatpush1.msra.mxu0 0.0
    %430 = vmatprep.subr.mxu0 0.0
    %431 = vmatpush1.msra.mxu0 0.0
    %432 = vmatprep.subr.mxu0 0.0
    %433 = vmatpush1.msra.mxu0 0.0
    %434 = vmatprep.subr.mxu0 0.0
    %435 = vmatpush1.msra.mxu0 0.0
    %436 = vmatprep.subr.mxu0 0.0
    %437 = vmatpush1.msra.mxu0 0.0
    %438 = vmatprep.mubr.f32.mxu0 0.0
    %439 = vmatmul.mubr.f32.gmra.mrb[0].mxu0 %v369
    %v440 = vpop.f32.mrb[0].mxu0
    %v441 = vadd.f32 0.0, %v440
    %v442 = vpop.f32.mrb[0].mxu0
    %443 = vmatprep.mubr.f32.mxu0 0.0
    %444 = vmatmul.mubr.f32.gmra.mrb[0].mxu0 %v372
    %v445 = vpop.f32.mrb[0].mxu0
    %v446 = vadd.f32 0.0, %v445
    %v447 = vpop.f32.mrb[0].mxu0
    %448 = vdwg.mxu0
    %449 = vst.msk [vmem:[#allocation2] sm:$0xff] %vm66, %v441
    %450 = vst.msk [vmem:[#allocation2 + $0x8] sm:$0xff] %vm66, %v446
    %451 = vrot.lane.b32.xlu0 %v140, 96
    %v452 = vpop.permute.xlu0 %451
    %453 = vrot.lane.b32.xlu0 %v146, 96
    %v454 = vpop.permute.xlu0 %453
    %455 = vrot.lane.b32.xlu0 %v142, 96
    %v456 = vpop.permute.xlu0 %455
    %457 = vrot.lane.b32.xlu0 %v148, 96
    %v458 = vpop.permute.xlu0 %457
    %v459 = vsel %vm66, %v452, 0
    %v461 = vsel %vm66, %v454, 0
    %v463 = vsel %vm66, %v456, 0
    %v465 = vsel %vm66, %v458, 0
    %467 = vmatprep.subr.mxu0 0.0
    %468 = vmatpush1.xpose.msra.mxu0 %v463
    %469 = vmatprep.subr.mxu0 0.0
    %470 = vmatpush1.xpose.msra.mxu0 %v465
    %471 = vmatprep.subr.mxu0 0.0
    %472 = vmatpush1.xpose.msra.mxu0 0.0
    %473 = vmatprep.subr.mxu0 0.0
    %474 = vmatpush1.xpose.msra.mxu0 0.0
    %475 = vmatprep.subr.mxu0 0.0
    %476 = vmatpush1.xpose.msra.mxu0 0.0
    %477 = vmatprep.subr.mxu0 0.0
    %478 = vmatpush1.xpose.msra.mxu0 0.0
    %479 = vmatprep.subr.mxu0 0.0
    %480 = vmatpush1.xpose.msra.mxu0 0.0
    %481 = vmatprep.subr.mxu0 0.0
    %482 = vmatpush1.xpose.msra.mxu0 0.0
    %483 = vmatprep.subr.mxu0 0.0
    %484 = vmatpush1.xpose.msra.mxu0 0.0
    %485 = vmatprep.subr.mxu0 0.0
    %486 = vmatpush1.xpose.msra.mxu0 0.0
    %487 = vmatprep.subr.mxu0 0.0
    %488 = vmatpush1.xpose.msra.mxu0 0.0
    %489 = vmatprep.subr.mxu0 0.0
    %490 = vmatpush1.xpose.msra.mxu0 0.0
    %491 = vmatprep.subr.mxu0 0.0
    %492 = vmatpush1.xpose.msra.mxu0 0.0
    %493 = vmatprep.subr.mxu0 0.0
    %494 = vmatpush1.xpose.msra.mxu0 0.0
    %495 = vmatprep.subr.mxu0 0.0
    %496 = vmatpush1.xpose.msra.mxu0 0.0
    %497 = vmatprep.subr.mxu0 0.0
    %498 = vmatpush1.xpose.msra.mxu0 0.0
    %499 = vmatprep.subr.mxu0 0.0
    %500 = vmatpush1.xpose.msra.mxu0 0.0
    %501 = vmatprep.subr.mxu0 0.0
    %502 = vmatpush1.xpose.msra.mxu0 0.0
    %503 = vmatprep.subr.mxu0 0.0
    %504 = vmatpush1.xpose.msra.mxu0 0.0
    %505 = vmatprep.subr.mxu0 0.0
    %506 = vmatpush1.xpose.msra.mxu0 0.0
    %507 = vmatprep.subr.mxu0 0.0
    %508 = vmatpush1.xpose.msra.mxu0 0.0
    %509 = vmatprep.subr.mxu0 0.0
    %510 = vmatpush1.xpose.msra.mxu0 0.0
    %511 = vmatprep.subr.mxu0 0.0
    %512 = vmatpush1.xpose.msra.mxu0 0.0
    %513 = vmatprep.subr.mxu0 0.0
    %514 = vmatpush1.xpose.msra.mxu0 0.0
    %515 = vmatprep.subr.mxu0 0.0
    %516 = vmatpush1.xpose.msra.mxu0 0.0
    %517 = vmatprep.subr.mxu0 0.0
    %518 = vmatpush1.xpose.msra.mxu0 0.0
    %519 = vmatprep.subr.mxu0 0.0
    %520 = vmatpush1.xpose.msra.mxu0 0.0
    %521 = vmatprep.subr.mxu0 0.0
    %522 = vmatpush1.xpose.msra.mxu0 0.0
    %523 = vmatprep.subr.mxu0 0.0
    %524 = vmatpush1.xpose.msra.mxu0 0.0
    %525 = vmatprep.subr.mxu0 0.0
    %526 = vmatpush1.xpose.msra.mxu0 0.0
    %527 = vmatprep.subr.mxu0 0.0
    %528 = vmatpush1.xpose.msra.mxu0 0.0
    %529 = vmatprep.subr.mxu0 0.0
    %530 = vmatpush1.xpose.msra.mxu0 0.0
    %531 = vmatprep.mubr.f32.mxu0 0.0
    %532 = vmatmul.mubr.f32.gmra.mrb[0].mxu0 %v459
    %v533 = vpop.f32.mrb[0].mxu0
    %v534 = vadd.f32 0.0, %v533
    %v535 = vpop.f32.mrb[0].mxu0
    %536 = vmatprep.mubr.f32.mxu0 0.0
    %537 = vmatmul.mubr.f32.gmra.mrb[0].mxu0 %v461
    %v538 = vpop.f32.mrb[0].mxu0
    %v539 = vadd.f32 0.0, %v538
    %v540 = vpop.f32.mrb[0].mxu0
    %541 = vdwg.mxu0
    %v542 = vsel %vm234, %v534, -inf
    %v543 = vsel %vm235, %v539, -inf
    %v544 = vsel %vm340, 0.0, %v542
    %v545 = vsel %vm341, 0.0, %v543
    %v546 = vsel %vm238, %v544, -inf
    %547 = vmax.xlane.f32.xlu0 %v546
    %v548 = vpop.xlane.xlu0 %547
    %v549 = vsel %vm238, %v545, -inf
    %550 = vmax.xlane.f32.xlu0 %v549
    %v551 = vpop.xlane.xlu0 %550
    %v552 = vsub.f32 %v544, %v548
    %v553 = vsub.f32 %v545, %v551
    %v554 = vmul.f32 %v552, 1.442695
    %v555 = vpow.pop %v554
    %v556 = vmul.f32 %v553, 1.442695
    %v557 = vpow.pop %v556
    %v558 = vsel %vm238, %v555, 0.0
    %559 = vadd.xlane.f32.xlu0 %v558
    %v560 = vpop.xlane.xlu0 %559
    %v561 = vsel %vm238, %v557, 0.0
    %562 = vadd.xlane.f32.xlu0 %v561
    %v563 = vpop.xlane.xlu0 %562
    %v564 = vrcp.pop %v560
    %v565 = vrcp.pop %v563
    %v566 = vmul.f32 %v555, %v564
    %v567 = vmul.f32 %v557, %v565
    %v568 = vsel %vm340, 0.0, %v566
    %v569 = vsel %vm341, 0.0, %v567
    %572 = vrot.lane.b32.xlu0 %v217, 96
    %v573 = vpop.permute.xlu0 %572
    %574 = vrot.lane.b32.xlu0 %v222, 96
    %v575 = vpop.permute.xlu0 %574
    %v579 = vsel %vm238, %v568, 0
    %v582 = vsel %vm238, %v569, 0
    %584 = vmatprep.subr.mxu0 0.0
    %585 = vmatpush1.msra.mxu0 %v573
    %586 = vmatprep.subr.mxu0 0.0
    %587 = vmatpush1.msra.mxu0 %v575
    %588 = vmatprep.subr.mxu0 0.0
    %589 = vmatpush1.msra.mxu0 0.0
    %590 = vmatprep.subr.mxu0 0.0
    %591 = vmatpush1.msra.mxu0 0.0
    %592 = vmatprep.subr.mxu0 0.0
    %593 = vmatpush1.msra.mxu0 0.0
    %594 = vmatprep.subr.mxu0 0.0
    %595 = vmatpush1.msra.mxu0 0.0
    %596 = vmatprep.subr.mxu0 0.0
    %597 = vmatpush1.msra.mxu0 0.0
    %598 = vmatprep.subr.mxu0 0.0
    %599 = vmatpush1.msra.mxu0 0.0
    %600 = vmatprep.subr.mxu0 0.0
    %601 = vmatpush1.msra.mxu0 0.0
    %602 = vmatprep.subr.mxu0 0.0
    %603 = vmatpush1.msra.mxu0 0.0
    %604 = vmatprep.subr.mxu0 0.0
    %605 = vmatpush1.msra.mxu0 0.0
    %606 = vmatprep.subr.mxu0 0.0
    %607 = vmatpush1.msra.mxu0 0.0
    %608 = vmatprep.subr.mxu0 0.0
    %609 = vmatpush1.msra.mxu0 0.0
    %610 = vmatprep.subr.mxu0 0.0
    %611 = vmatpush1.msra.mxu0 0.0
    %612 = vmatprep.subr.mxu0 0.0
    %613 = vmatpush1.msra.mxu0 0.0
    %614 = vmatprep.subr.mxu0 0.0
    %615 = vmatpush1.msra.mxu0 0.0
    %616 = vmatprep.subr.mxu0 0.0
    %617 = vmatpush1.msra.mxu0 0.0
    %618 = vmatprep.subr.mxu0 0.0
    %619 = vmatpush1.msra.mxu0 0.0
    %620 = vmatprep.subr.mxu0 0.0
    %621 = vmatpush1.msra.mxu0 0.0
    %622 = vmatprep.subr.mxu0 0.0
    %623 = vmatpush1.msra.mxu0 0.0
    %624 = vmatprep.subr.mxu0 0.0
    %625 = vmatpush1.msra.mxu0 0.0
    %626 = vmatprep.subr.mxu0 0.0
    %627 = vmatpush1.msra.mxu0 0.0
    %628 = vmatprep.subr.mxu0 0.0
    %629 = vmatpush1.msra.mxu0 0.0
    %630 = vmatprep.subr.mxu0 0.0
    %631 = vmatpush1.msra.mxu0 0.0
    %632 = vmatprep.subr.mxu0 0.0
    %633 = vmatpush1.msra.mxu0 0.0
    %634 = vmatprep.subr.mxu0 0.0
    %635 = vmatpush1.msra.mxu0 0.0
    %636 = vmatprep.subr.mxu0 0.0
    %637 = vmatpush1.msra.mxu0 0.0
    %638 = vmatprep.subr.mxu0 0.0
    %639 = vmatpush1.msra.mxu0 0.0
    %640 = vmatprep.subr.mxu0 0.0
    %641 = vmatpush1.msra.mxu0 0.0
    %642 = vmatprep.subr.mxu0 0.0
    %643 = vmatpush1.msra.mxu0 0.0
    %644 = vmatprep.subr.mxu0 0.0
    %645 = vmatpush1.msra.mxu0 0.0
    %646 = vmatprep.subr.mxu0 0.0
    %647 = vmatpush1.msra.mxu0 0.0
    %648 = vmatprep.mubr.f32.mxu0 0.0
    %649 = vmatmul.mubr.f32.gmra.mrb[0].mxu0 %v579
    %v650 = vpop.f32.mrb[0].mxu0
    %v651 = vadd.f32 0.0, %v650
    %v652 = vpop.f32.mrb[0].mxu0
    %653 = vmatprep.mubr.f32.mxu0 0.0
    %654 = vmatmul.mubr.f32.gmra.mrb[0].mxu0 %v582
    %v655 = vpop.f32.mrb[0].mxu0
    %v656 = vadd.f32 0.0, %v655
    %v657 = vpop.f32.mrb[0].mxu0
    %658 = vdwg.mxu0
    %661 = vrot.lane.b32.xlu0 %v651, 32
    %v662 = vpop.permute.xlu0 %661
    %663 = vrot.lane.b32.xlu0 %v656, 32
    %v664 = vpop.permute.xlu0 %663
    %vm667 = vcmask 523520
    %668 = vst.msk [vmem:[#allocation2] sm:$0xff] %vm667, %v662
    %669 = vst.msk [vmem:[#allocation2 + $0x8] sm:$0xff] %vm667, %v664
    %670 = vrot.lane.b32.xlu0 %v140, 64
    %v671 = vpop.permute.xlu0 %670
    %672 = vrot.lane.b32.xlu0 %v146, 64
    %v673 = vpop.permute.xlu0 %672
    %674 = vrot.lane.b32.xlu0 %v142, 64
    %v675 = vpop.permute.xlu0 %674
    %676 = vrot.lane.b32.xlu0 %v148, 64
    %v677 = vpop.permute.xlu0 %676
    %v678 = vsel %vm66, %v671, 0
    %v680 = vsel %vm66, %v673, 0
    %v682 = vsel %vm66, %v675, 0
    %v684 = vsel %vm66, %v677, 0
    %686 = vmatprep.subr.mxu0 0.0
    %687 = vmatpush1.xpose.msra.mxu0 %v682
    %688 = vmatprep.subr.mxu0 0.0
    %689 = vmatpush1.xpose.msra.mxu0 %v684
    %690 = vmatprep.subr.mxu0 0.0
    %691 = vmatpush1.xpose.msra.mxu0 0.0
    %692 = vmatprep.subr.mxu0 0.0
    %693 = vmatpush1.xpose.msra.mxu0 0.0
    %694 = vmatprep.subr.mxu0 0.0
    %695 = vmatpush1.xpose.msra.mxu0 0.0
    %696 = vmatprep.subr.mxu0 0.0
    %697 = vmatpush1.xpose.msra.mxu0 0.0
    %698 = vmatprep.subr.mxu0 0.0
    %699 = vmatpush1.xpose.msra.mxu0 0.0
    %700 = vmatprep.subr.mxu0 0.0
    %701 = vmatpush1.xpose.msra.mxu0 0.0
    %702 = vmatprep.subr.mxu0 0.0
    %703 = vmatpush1.xpose.msra.mxu0 0.0
    %704 = vmatprep.subr.mxu0 0.0
    %705 = vmatpush1.xpose.msra.mxu0 0.0
    %706 = vmatprep.subr.mxu0 0.0
    %707 = vmatpush1.xpose.msra.mxu0 0.0
    %708 = vmatprep.subr.mxu0 0.0
    %709 = vmatpush1.xpose.msra.mxu0 0.0
    %710 = vmatprep.subr.mxu0 0.0
    %711 = vmatpush1.xpose.msra.mxu0 0.0
    %712 = vmatprep.subr.mxu0 0.0
    %713 = vmatpush1.xpose.msra.mxu0 0.0
    %714 = vmatprep.subr.mxu0 0.0
    %715 = vmatpush1.xpose.msra.mxu0 0.0
    %716 = vmatprep.subr.mxu0 0.0
    %717 = vmatpush1.xpose.msra.mxu0 0.0
    %718 = vmatprep.subr.mxu0 0.0
    %719 = vmatpush1.xpose.msra.mxu0 0.0
    %720 = vmatprep.subr.mxu0 0.0
    %721 = vmatpush1.xpose.msra.mxu0 0.0
    %722 = vmatprep.subr.mxu0 0.0
    %723 = vmatpush1.xpose.msra.mxu0 0.0
    %724 = vmatprep.subr.mxu0 0.0
    %725 = vmatpush1.xpose.msra.mxu0 0.0
    %726 = vmatprep.subr.mxu0 0.0
    %727 = vmatpush1.xpose.msra.mxu0 0.0
    %728 = vmatprep.subr.mxu0 0.0
    %729 = vmatpush1.xpose.msra.mxu0 0.0
    %730 = vmatprep.subr.mxu0 0.0
    %731 = vmatpush1.xpose.msra.mxu0 0.0
    %732 = vmatprep.subr.mxu0 0.0
    %733 = vmatpush1.xpose.msra.mxu0 0.0
    %734 = vmatprep.subr.mxu0 0.0
    %735 = vmatpush1.xpose.msra.mxu0 0.0
    %736 = vmatprep.subr.mxu0 0.0
    %737 = vmatpush1.xpose.msra.mxu0 0.0
    %738 = vmatprep.subr.mxu0 0.0
    %739 = vmatpush1.xpose.msra.mxu0 0.0
    %740 = vmatprep.subr.mxu0 0.0
    %741 = vmatpush1.xpose.msra.mxu0 0.0
    %742 = vmatprep.subr.mxu0 0.0
    %743 = vmatpush1.xpose.msra.mxu0 0.0
    %744 = vmatprep.subr.mxu0 0.0
    %745 = vmatpush1.xpose.msra.mxu0 0.0
    %746 = vmatprep.subr.mxu0 0.0
    %747 = vmatpush1.xpose.msra.mxu0 0.0
    %748 = vmatprep.subr.mxu0 0.0
    %749 = vmatpush1.xpose.msra.mxu0 0.0
    %750 = vmatprep.mubr.f32.mxu0 0.0
    %751 = vmatmul.mubr.f32.gmra.mrb[0].mxu0 %v678
    %v752 = vpop.f32.mrb[0].mxu0
    %v753 = vadd.f32 0.0, %v752
    %v754 = vpop.f32.mrb[0].mxu0
    %755 = vmatprep.mubr.f32.mxu0 0.0
    %756 = vmatmul.mubr.f32.gmra.mrb[0].mxu0 %v680
    %v757 = vpop.f32.mrb[0].mxu0
    %v758 = vadd.f32 0.0, %v757
    %v759 = vpop.f32.mrb[0].mxu0
    %760 = vdwg.mxu0
    %v761 = vsel %vm234, %v753, -inf
    %v762 = vsel %vm235, %v758, -inf
    %v763 = vsel %vm340, 0.0, %v761
    %v764 = vsel %vm341, 0.0, %v762
    %v765 = vsel %vm238, %v763, -inf
    %766 = vmax.xlane.f32.xlu0 %v765
    %v767 = vpop.xlane.xlu0 %766
    %v768 = vsel %vm238, %v764, -inf
    %769 = vmax.xlane.f32.xlu0 %v768
    %v770 = vpop.xlane.xlu0 %769
    %v771 = vsub.f32 %v763, %v767
    %v772 = vsub.f32 %v764, %v770
    %v773 = vmul.f32 %v771, 1.442695
    %v774 = vpow.pop %v773
    %v775 = vmul.f32 %v772, 1.442695
    %v776 = vpow.pop %v775
    %v777 = vsel %vm238, %v774, 0.0
    %778 = vadd.xlane.f32.xlu0 %v777
    %v779 = vpop.xlane.xlu0 %778
    %v780 = vsel %vm238, %v776, 0.0
    %781 = vadd.xlane.f32.xlu0 %v780
    %v782 = vpop.xlane.xlu0 %781
    %v783 = vrcp.pop %v779
    %v784 = vrcp.pop %v782
    %v785 = vmul.f32 %v774, %v783
    %v786 = vmul.f32 %v776, %v784
    %v787 = vsel %vm340, 0.0, %v785
    %v788 = vsel %vm341, 0.0, %v786
    %789 = vrot.lane.b32.xlu0 %v217, 64
    %v790 = vpop.permute.xlu0 %789
    %791 = vrot.lane.b32.xlu0 %v222, 64
    %v792 = vpop.permute.xlu0 %791
    %v796 = vsel %vm238, %v787, 0
    %v799 = vsel %vm238, %v788, 0
    %801 = vmatprep.subr.mxu0 0.0
    %802 = vmatpush1.msra.mxu0 %v790
    %803 = vmatprep.subr.mxu0 0.0
    %804 = vmatpush1.msra.mxu0 %v792
    %805 = vmatprep.subr.mxu0 0.0
    %806 = vmatpush1.msra.mxu0 0.0
    %807 = vmatprep.subr.mxu0 0.0
    %808 = vmatpush1.msra.mxu0 0.0
    %809 = vmatprep.subr.mxu0 0.0
    %810 = vmatpush1.msra.mxu0 0.0
    %811 = vmatprep.subr.mxu0 0.0
    %812 = vmatpush1.msra.mxu0 0.0
    %813 = vmatprep.subr.mxu0 0.0
    %814 = vmatpush1.msra.mxu0 0.0
    %815 = vmatprep.subr.mxu0 0.0
    %816 = vmatpush1.msra.mxu0 0.0
    %817 = vmatprep.subr.mxu0 0.0
    %818 = vmatpush1.msra.mxu0 0.0
    %819 = vmatprep.subr.mxu0 0.0
    %820 = vmatpush1.msra.mxu0 0.0
    %821 = vmatprep.subr.mxu0 0.0
    %822 = vmatpush1.msra.mxu0 0.0
    %823 = vmatprep.subr.mxu0 0.0
    %824 = vmatpush1.msra.mxu0 0.0
    %825 = vmatprep.subr.mxu0 0.0
    %826 = vmatpush1.msra.mxu0 0.0
    %827 = vmatprep.subr.mxu0 0.0
    %828 = vmatpush1.msra.mxu0 0.0
    %829 = vmatprep.subr.mxu0 0.0
    %830 = vmatpush1.msra.mxu0 0.0
    %831 = vmatprep.subr.mxu0 0.0
    %832 = vmatpush1.msra.mxu0 0.0
    %833 = vmatprep.subr.mxu0 0.0
    %834 = vmatpush1.msra.mxu0 0.0
    %835 = vmatprep.subr.mxu0 0.0
    %836 = vmatpush1.msra.mxu0 0.0
    %837 = vmatprep.subr.mxu0 0.0
    %838 = vmatpush1.msra.mxu0 0.0
    %839 = vmatprep.subr.mxu0 0.0
    %840 = vmatpush1.msra.mxu0 0.0
    %841 = vmatprep.subr.mxu0 0.0
    %842 = vmatpush1.msra.mxu0 0.0
    %843 = vmatprep.subr.mxu0 0.0
    %844 = vmatpush1.msra.mxu0 0.0
    %845 = vmatprep.subr.mxu0 0.0
    %846 = vmatpush1.msra.mxu0 0.0
    %847 = vmatprep.subr.mxu0 0.0
    %848 = vmatpush1.msra.mxu0 0.0
    %849 = vmatprep.subr.mxu0 0.0
    %850 = vmatpush1.msra.mxu0 0.0
    %851 = vmatprep.subr.mxu0 0.0
    %852 = vmatpush1.msra.mxu0 0.0
    %853 = vmatprep.subr.mxu0 0.0
    %854 = vmatpush1.msra.mxu0 0.0
    %855 = vmatprep.subr.mxu0 0.0
    %856 = vmatpush1.msra.mxu0 0.0
    %857 = vmatprep.subr.mxu0 0.0
    %858 = vmatpush1.msra.mxu0 0.0
    %859 = vmatprep.subr.mxu0 0.0
    %860 = vmatpush1.msra.mxu0 0.0
    %861 = vmatprep.subr.mxu0 0.0
    %862 = vmatpush1.msra.mxu0 0.0
    %863 = vmatprep.subr.mxu0 0.0
    %864 = vmatpush1.msra.mxu0 0.0
    %865 = vmatprep.mubr.f32.mxu0 0.0
    %866 = vmatmul.mubr.f32.gmra.mrb[0].mxu0 %v796
    %v867 = vpop.f32.mrb[0].mxu0
    %v868 = vadd.f32 0.0, %v867
    %v869 = vpop.f32.mrb[0].mxu0
    %870 = vmatprep.mubr.f32.mxu0 0.0
    %871 = vmatmul.mubr.f32.gmra.mrb[0].mxu0 %v799
    %v872 = vpop.f32.mrb[0].mxu0
    %v873 = vadd.f32 0.0, %v872
    %v874 = vpop.f32.mrb[0].mxu0
    %875 = vdwg.mxu0
    %878 = vrot.lane.b32.xlu0 %v868, 64
    %v879 = vpop.permute.xlu0 %878
    %880 = vrot.lane.b32.xlu0 %v873, 64
    %v881 = vpop.permute.xlu0 %880
    %vm884 = vcmask 785920
    %885 = vst.msk [vmem:[#allocation2] sm:$0xff] %vm884, %v879
    %886 = vst.msk [vmem:[#allocation2 + $0x8] sm:$0xff] %vm884, %v881
    %887 = vrot.lane.b32.xlu0 %v140, 32
    %v888 = vpop.permute.xlu0 %887
    %889 = vrot.lane.b32.xlu0 %v146, 32
    %v890 = vpop.permute.xlu0 %889
    %891 = vrot.lane.b32.xlu0 %v142, 32
    %v892 = vpop.permute.xlu0 %891
    %893 = vrot.lane.b32.xlu0 %v148, 32
    %v894 = vpop.permute.xlu0 %893
    %v895 = vsel %vm66, %v888, 0
    %v897 = vsel %vm66, %v890, 0
    %v899 = vsel %vm66, %v892, 0
    %v901 = vsel %vm66, %v894, 0
    %903 = vmatprep.subr.mxu0 0.0
    %904 = vmatpush1.xpose.msra.mxu0 %v899
    %905 = vmatprep.subr.mxu0 0.0
    %906 = vmatpush1.xpose.msra.mxu0 %v901
    %907 = vmatprep.subr.mxu0 0.0
    %908 = vmatpush1.xpose.msra.mxu0 0.0
    %909 = vmatprep.subr.mxu0 0.0
    %910 = vmatpush1.xpose.msra.mxu0 0.0
    %911 = vmatprep.subr.mxu0 0.0
    %912 = vmatpush1.xpose.msra.mxu0 0.0
    %913 = vmatprep.subr.mxu0 0.0
    %914 = vmatpush1.xpose.msra.mxu0 0.0
    %915 = vmatprep.subr.mxu0 0.0
    %916 = vmatpush1.xpose.msra.mxu0 0.0
    %917 = vmatprep.subr.mxu0 0.0
    %918 = vmatpush1.xpose.msra.mxu0 0.0
    %919 = vmatprep.subr.mxu0 0.0
    %920 = vmatpush1.xpose.msra.mxu0 0.0
    %921 = vmatprep.subr.mxu0 0.0
    %922 = vmatpush1.xpose.msra.mxu0 0.0
    %923 = vmatprep.subr.mxu0 0.0
    %924 = vmatpush1.xpose.msra.mxu0 0.0
    %925 = vmatprep.subr.mxu0 0.0
    %926 = vmatpush1.xpose.msra.mxu0 0.0
    %927 = vmatprep.subr.mxu0 0.0
    %928 = vmatpush1.xpose.msra.mxu0 0.0
    %929 = vmatprep.subr.mxu0 0.0
    %930 = vmatpush1.xpose.msra.mxu0 0.0
    %931 = vmatprep.subr.mxu0 0.0
    %932 = vmatpush1.xpose.msra.mxu0 0.0
    %933 = vmatprep.subr.mxu0 0.0
    %934 = vmatpush1.xpose.msra.mxu0 0.0
    %935 = vmatprep.subr.mxu0 0.0
    %936 = vmatpush1.xpose.msra.mxu0 0.0
    %937 = vmatprep.subr.mxu0 0.0
    %938 = vmatpush1.xpose.msra.mxu0 0.0
    %939 = vmatprep.subr.mxu0 0.0
    %940 = vmatpush1.xpose.msra.mxu0 0.0
    %941 = vmatprep.subr.mxu0 0.0
    %942 = vmatpush1.xpose.msra.mxu0 0.0
    %943 = vmatprep.subr.mxu0 0.0
    %944 = vmatpush1.xpose.msra.mxu0 0.0
    %945 = vmatprep.subr.mxu0 0.0
    %946 = vmatpush1.xpose.msra.mxu0 0.0
    %947 = vmatprep.subr.mxu0 0.0
    %948 = vmatpush1.xpose.msra.mxu0 0.0
    %949 = vmatprep.subr.mxu0 0.0
    %950 = vmatpush1.xpose.msra.mxu0 0.0
    %951 = vmatprep.subr.mxu0 0.0
    %952 = vmatpush1.xpose.msra.mxu0 0.0
    %953 = vmatprep.subr.mxu0 0.0
    %954 = vmatpush1.xpose.msra.mxu0 0.0
    %955 = vmatprep.subr.mxu0 0.0
    %956 = vmatpush1.xpose.msra.mxu0 0.0
    %957 = vmatprep.subr.mxu0 0.0
    %958 = vmatpush1.xpose.msra.mxu0 0.0
    %959 = vmatprep.subr.mxu0 0.0
    %960 = vmatpush1.xpose.msra.mxu0 0.0
    %961 = vmatprep.subr.mxu0 0.0
    %962 = vmatpush1.xpose.msra.mxu0 0.0
    %963 = vmatprep.subr.mxu0 0.0
    %964 = vmatpush1.xpose.msra.mxu0 0.0
    %965 = vmatprep.subr.mxu0 0.0
    %966 = vmatpush1.xpose.msra.mxu0 0.0
    %967 = vmatprep.mubr.f32.mxu0 0.0
    %968 = vmatmul.mubr.f32.gmra.mrb[0].mxu0 %v895
    %v969 = vpop.f32.mrb[0].mxu0
    %v970 = vadd.f32 0.0, %v969
    %v971 = vpop.f32.mrb[0].mxu0
    %972 = vmatprep.mubr.f32.mxu0 0.0
    %973 = vmatmul.mubr.f32.gmra.mrb[0].mxu0 %v897
    %v974 = vpop.f32.mrb[0].mxu0
    %v975 = vadd.f32 0.0, %v974
    %v976 = vpop.f32.mrb[0].mxu0
    %977 = vdwg.mxu0
    %v978 = vsel %vm234, %v970, -inf
    %v979 = vsel %vm235, %v975, -inf
    %v980 = vsel %vm340, 0.0, %v978
    %v981 = vsel %vm341, 0.0, %v979
    %v982 = vsel %vm238, %v980, -inf
    %983 = vmax.xlane.f32.xlu0 %v982
    %v984 = vpop.xlane.xlu0 %983
    %v985 = vsel %vm238, %v981, -inf
    %986 = vmax.xlane.f32.xlu0 %v985
    %v987 = vpop.xlane.xlu0 %986
    %v988 = vsub.f32 %v980, %v984
    %v989 = vsub.f32 %v981, %v987
    %v990 = vmul.f32 %v988, 1.442695
    %v991 = vpow.pop %v990
    %v992 = vmul.f32 %v989, 1.442695
    %v993 = vpow.pop %v992
    %v994 = vsel %vm238, %v991, 0.0
    %995 = vadd.xlane.f32.xlu0 %v994
    %v996 = vpop.xlane.xlu0 %995
    %v997 = vsel %vm238, %v993, 0.0
    %998 = vadd.xlane.f32.xlu0 %v997
    %v999 = vpop.xlane.xlu0 %998
    %v1000 = vrcp.pop %v996
    %v1001 = vrcp.pop %v999
    %v1002 = vmul.f32 %v991, %v1000
    %v1003 = vmul.f32 %v993, %v1001
    %v1004 = vsel %vm340, 0.0, %v1002
    %v1005 = vsel %vm341, 0.0, %v1003
    %1006 = vrot.lane.b32.xlu0 %v217, 32
    %v1007 = vpop.permute.xlu0 %1006
    %1008 = vrot.lane.b32.xlu0 %v222, 32
    %v1009 = vpop.permute.xlu0 %1008
    %v1013 = vsel %vm238, %v1004, 0
    %v1016 = vsel %vm238, %v1005, 0
    %1018 = vmatprep.subr.mxu0 0.0
    %1019 = vmatpush1.msra.mxu0 %v1007
    %1020 = vmatprep.subr.mxu0 0.0
    %1021 = vmatpush1.msra.mxu0 %v1009
    %1022 = vmatprep.subr.mxu0 0.0
    %1023 = vmatpush1.msra.mxu0 0.0
    %1024 = vmatprep.subr.mxu0 0.0
    %1025 = vmatpush1.msra.mxu0 0.0
    %1026 = vmatprep.subr.mxu0 0.0
    %1027 = vmatpush1.msra.mxu0 0.0
    %1028 = vmatprep.subr.mxu0 0.0
    %1029 = vmatpush1.msra.mxu0 0.0
    %1030 = vmatprep.subr.mxu0 0.0
    %1031 = vmatpush1.msra.mxu0 0.0
    %1032 = vmatprep.subr.mxu0 0.0
    %1033 = vmatpush1.msra.mxu0 0.0
    %1034 = vmatprep.subr.mxu0 0.0
    %1035 = vmatpush1.msra.mxu0 0.0
    %1036 = vmatprep.subr.mxu0 0.0
    %1037 = vmatpush1.msra.mxu0 0.0
    %1038 = vmatprep.subr.mxu0 0.0
    %1039 = vmatpush1.msra.mxu0 0.0
    %1040 = vmatprep.subr.mxu0 0.0
    %1041 = vmatpush1.msra.mxu0 0.0
    %1042 = vmatprep.subr.mxu0 0.0
    %1043 = vmatpush1.msra.mxu0 0.0
    %1044 = vmatprep.subr.mxu0 0.0
    %1045 = vmatpush1.msra.mxu0 0.0
    %1046 = vmatprep.subr.mxu0 0.0
    %1047 = vmatpush1.msra.mxu0 0.0
    %1048 = vmatprep.subr.mxu0 0.0
    %1049 = vmatpush1.msra.mxu0 0.0
    %1050 = vmatprep.subr.mxu0 0.0
    %1051 = vmatpush1.msra.mxu0 0.0
    %1052 = vmatprep.subr.mxu0 0.0
    %1053 = vmatpush1.msra.mxu0 0.0
    %1054 = vmatprep.subr.mxu0 0.0
    %1055 = vmatpush1.msra.mxu0 0.0
    %1056 = vmatprep.subr.mxu0 0.0
    %1057 = vmatpush1.msra.mxu0 0.0
    %1058 = vmatprep.subr.mxu0 0.0
    %1059 = vmatpush1.msra.mxu0 0.0
    %1060 = vmatprep.subr.mxu0 0.0
    %1061 = vmatpush1.msra.mxu0 0.0
    %1062 = vmatprep.subr.mxu0 0.0
    %1063 = vmatpush1.msra.mxu0 0.0
    %1064 = vmatprep.subr.mxu0 0.0
    %1065 = vmatpush1.msra.mxu0 0.0
    %1066 = vmatprep.subr.mxu0 0.0
    %1067 = vmatpush1.msra.mxu0 0.0
    %1068 = vmatprep.subr.mxu0 0.0
    %1069 = vmatpush1.msra.mxu0 0.0
    %1070 = vmatprep.subr.mxu0 0.0
    %1071 = vmatpush1.msra.mxu0 0.0
    %1072 = vmatprep.subr.mxu0 0.0
    %1073 = vmatpush1.msra.mxu0 0.0
    %1074 = vmatprep.subr.mxu0 0.0
    %1075 = vmatpush1.msra.mxu0 0.0
    %1076 = vmatprep.subr.mxu0 0.0
    %1077 = vmatpush1.msra.mxu0 0.0
    %1078 = vmatprep.subr.mxu0 0.0
    %1079 = vmatpush1.msra.mxu0 0.0
    %1080 = vmatprep.subr.mxu0 0.0
    %1081 = vmatpush1.msra.mxu0 0.0
    %1082 = vmatprep.mubr.f32.mxu0 0.0
    %1083 = vmatmul.mubr.f32.gmra.mrb[0].mxu0 %v1013
    %v1084 = vpop.f32.mrb[0].mxu0
    %v1085 = vadd.f32 0.0, %v1084
    %v1086 = vpop.f32.mrb[0].mxu0
    %1087 = vmatprep.mubr.f32.mxu0 0.0
    %1088 = vmatmul.mubr.f32.gmra.mrb[0].mxu0 %v1016
    %v1089 = vpop.f32.mrb[0].mxu0
    %v1090 = vadd.f32 0.0, %v1089
    %v1091 = vpop.f32.mrb[0].mxu0
    %1092 = vdwg.mxu0
    %1095 = vrot.lane.b32.xlu0 %v1085, 96
    %v1096 = vpop.permute.xlu0 %1095
    %1097 = vrot.lane.b32.xlu0 %v1090, 96
    %v1098 = vpop.permute.xlu0 %1097
    %vm1101 = vcmask 1048320
    %1102 = vst.msk [vmem:[#allocation2] sm:$0xff] %vm1101, %v1096
    %1103 = vst.msk [vmem:[#allocation2 + $0x8] sm:$0xff] %vm1101, %v1098
    %v1104 = vld [vmem:[#allocation2] sm:$0xff]
    %v1105 = vld [vmem:[#allocation2 + $0x8] sm:$0xff]
    %v1106 = vld [vmem:[%s3] sm:$0xff]
    %v1107 = vld [vmem:[%s3 + $0x8] sm:$0xff]
    %v1108 = vld [vmem:[%s3 + $0x10] sm:$0xff]
    %v1109 = vld [vmem:[%s3 + $0x18] sm:$0xff]
    %v1110 = vld [vmem:[%s3 + $0x20] sm:$0xff]
    %v1111 = vld [vmem:[%s3 + $0x28] sm:$0xff]
    %v1112 = vld [vmem:[%s3 + $0x30] sm:$0xff]
    %v1113 = vld [vmem:[%s3 + $0x38] sm:$0xff]
    %v1114 = vld [vmem:[%s3 + $0x40] sm:$0xff]
    %v1115 = vld [vmem:[%s3 + $0x48] sm:$0xff]
    %v1116 = vld [vmem:[%s3 + $0x50] sm:$0xff]
    %v1117 = vld [vmem:[%s3 + $0x58] sm:$0xff]
    %v1118 = vld [vmem:[%s3 + $0x60] sm:$0xff]
    %v1119 = vld [vmem:[%s3 + $0x68] sm:$0xff]
    %v1120 = vld [vmem:[%s3 + $0x70] sm:$0xff]
    %v1121 = vld [vmem:[%s3 + $0x78] sm:$0xff]
    %v1122 = vld [vmem:[%s4] sm:$0x1]
    %v1124 = vlaneseq
    %v1125 = vshrl.u32 %v1124, 7
    %v1126 = vsub.s32 0, %v1125
    %v1127 = vrot.slane %v1122, %v1126
    %1129 = vmatprep.subr.mxu0 0.0
    %1130 = vmatpush1.msra.mxu0 %v1106
    %1131 = vmatprep.subr.mxu0 0.0
    %1132 = vmatpush1.msra.mxu0 %v1107
    %1133 = vmatprep.subr.mxu0 0.0
    %1134 = vmatpush1.msra.mxu0 %v1108
    %1135 = vmatprep.subr.mxu0 0.0
    %1136 = vmatpush1.msra.mxu0 %v1109
    %1137 = vmatprep.subr.mxu0 0.0
    %1138 = vmatpush1.msra.mxu0 %v1110
    %1139 = vmatprep.subr.mxu0 0.0
    %1140 = vmatpush1.msra.mxu0 %v1111
    %1141 = vmatprep.subr.mxu0 0.0
    %1142 = vmatpush1.msra.mxu0 %v1112
    %1143 = vmatprep.subr.mxu0 0.0
    %1144 = vmatpush1.msra.mxu0 %v1113
    %1145 = vmatprep.subr.mxu0 0.0
    %1146 = vmatpush1.msra.mxu0 %v1114
    %1147 = vmatprep.subr.mxu0 0.0
    %1148 = vmatpush1.msra.mxu0 %v1115
    %1149 = vmatprep.subr.mxu0 0.0
    %1150 = vmatpush1.msra.mxu0 %v1116
    %1151 = vmatprep.subr.mxu0 0.0
    %1152 = vmatpush1.msra.mxu0 %v1117
    %1153 = vmatprep.subr.mxu0 0.0
    %1154 = vmatpush1.msra.mxu0 %v1118
    %1155 = vmatprep.subr.mxu0 0.0
    %1156 = vmatpush1.msra.mxu0 %v1119
    %1157 = vmatprep.subr.mxu0 0.0
    %1158 = vmatpush1.msra.mxu0 %v1120
    %1159 = vmatprep.subr.mxu0 0.0
    %1160 = vmatpush1.msra.mxu0 %v1121
    %1161 = vmatprep.subr.mxu0 0.0
    %1162 = vmatpush1.msra.mxu0 0.0
    %1163 = vmatprep.subr.mxu0 0.0
    %1164 = vmatpush1.msra.mxu0 0.0
    %1165 = vmatprep.subr.mxu0 0.0
    %1166 = vmatpush1.msra.mxu0 0.0
    %1167 = vmatprep.subr.mxu0 0.0
    %1168 = vmatpush1.msra.mxu0 0.0
    %1169 = vmatprep.subr.mxu0 0.0
    %1170 = vmatpush1.msra.mxu0 0.0
    %1171 = vmatprep.subr.mxu0 0.0
    %1172 = vmatpush1.msra.mxu0 0.0
    %1173 = vmatprep.subr.mxu0 0.0
    %1174 = vmatpush1.msra.mxu0 0.0
    %1175 = vmatprep.subr.mxu0 0.0
    %1176 = vmatpush1.msra.mxu0 0.0
    %1177 = vmatprep.subr.mxu0 0.0
    %1178 = vmatpush1.msra.mxu0 0.0
    %1179 = vmatprep.subr.mxu0 0.0
    %1180 = vmatpush1.msra.mxu0 0.0
    %1181 = vmatprep.subr.mxu0 0.0
    %1182 = vmatpush1.msra.mxu0 0.0
    %1183 = vmatprep.subr.mxu0 0.0
    %1184 = vmatpush1.msra.mxu0 0.0
    %1185 = vmatprep.subr.mxu0 0.0
    %1186 = vmatpush1.msra.mxu0 0.0
    %1187 = vmatprep.subr.mxu0 0.0
    %1188 = vmatpush1.msra.mxu0 0.0
    %1189 = vmatprep.subr.mxu0 0.0
    %1190 = vmatpush1.msra.mxu0 0.0
    %1191 = vmatprep.subr.mxu0 0.0
    %1192 = vmatpush1.msra.mxu0 0.0
    %1193 = vmatprep.mubr.f32.mxu0 0.0
    %1194 = vmatmul.mubr.f32.gmra.mrb[0].mxu0 %v1104
    %v1195 = vpop.f32.mrb[0].mxu0
    %v1196 = vadd.f32 %v1127, %v1195
    %v1197 = vpop.f32.mrb[0].mxu0
    %1198 = vmatprep.mubr.f32.mxu0 0.0
    %1199 = vmatmul.mubr.f32.gmra.mrb[0].mxu0 %v1105
    %v1200 = vpop.f32.mrb[0].mxu0
    %v1201 = vadd.f32 %v1127, %v1200
    %v1202 = vpop.f32.mrb[0].mxu0
    %1203 = vdwg.mxu0
    %1205 = vset.pattern.permute.xlu0 0
    %1206 = vperm.xlu0 %1205, %v48
    %v1207 = vpop.permute.xlu0 %1206
    %1210 = vset.pattern.permute.xlu0 0
    %1211 = vperm.xlu0 %1210, %v49
    %v1212 = vpop.permute.xlu0 %1211
    %v1214 = vmul.f32 %v1196, %v1207
    %v1215 = vmul.f32 %v1201, %v1212
    %1216 = vst.msk [vmem:[#allocation3] sm:$0xff] %vm66, %v1214
    %1217 = vst.msk [vmem:[#allocation3 + $0x8] sm:$0xff] %vm66, %v1215
    // Predicated region
    $region34: #{multi_head_self_attention.1} parent=1 // pred_check
      _
    $region35: #{multi_head_self_attention.1} parent=1 // pred_check_branch
      %1219 = sbr.rel (0) target = $region37
    $region36: #{multi_head_self_attention.1} parent=1 // pred_region
      %s1221 = ssub.s32 256, 256
      %1222 = vsyncadd [#allocation4], %s1221
      %s1223 = sshll.u32 [#allocation3], 4
      %s1224 = int_to_ptr.vmem [resolvable:$true] %s1223
      %1229 = dma.vmem_to_hbm [thread:$0]  %s1224, 256, %s8, [#allocation4], 128, 128, 8
    $region37: #{multi_head_self_attention.1} parent=1 // pred_fallthru
      _
    // Predicated region
    $region38: #{multi_head_self_attention.1} parent=1 // pred_check
      _
    $region39: #{multi_head_self_attention.1} parent=1 // pred_check_branch
      %1231 = sbr.rel (0) target = $region41
    $region40: #{multi_head_self_attention.1} parent=1 // pred_region
      %1232 = dma.done [#allocation4], 256
    $region41: #{multi_head_self_attention.1} parent=1 // pred_fallthru
      _
    %1233 = vsyncpa [#allocation4], 1

</llo_original>
